<compile_context>
chip_gen: v5e
topology: v5e:2x2
jax: 0.10.0
libtpu: 0.0.40
codegen_flags: <defaults>
</compile_context>

<pallas_src>
import jax
import jax.numpy as jnp
from jax import lax
from jax.experimental import pallas as pl
from jax.experimental.pallas import tpu as pltpu

# ----------------------- configuration (mirrors __init__) -----------------------
INPUT_DIM   = 16                       # dim
NUM_LABELS  = 2
HEADS       = 4
DIM_HEAD    = 4
INNER       = HEADS * DIM_HEAD         # attention inner dim = 16
MAX_POS_EMB = 512                      # Shaw rel-pos table size
CONV_INNER  = int(INPUT_DIM * (4 / INPUT_DIM))   # expansion_factor = 4/dim -> 4
KERNEL_SIZE = 3
SCALE       = DIM_HEAD ** -0.5
LN_EPS      = 1e-5
BN_EPS      = 1e-5

B = 2    # batch
N = 8    # sequence length


# --------------------------------- the kernel -----------------------------------
def context_conformer_kernel(
    x_ref, mask_ref, rel_ref, sshift_ref, pool_ref,
    wq_ref, wkv_ref, wo_ref, bo_ref,
    lng_ref, lnb_ref,
    w1_ref, b1_ref, dww_ref, dwb_ref, bns_ref, bnb_ref, w2_ref, b2_ref,
    wfc_ref, bfc_ref,
    out_ref,
):
    M = x_ref.shape[0]                                     # B*N flattened rows
    x = x_ref[...]                                         # (M, D)
    mask_bias = mask_ref[...]                              # (M, M) 0 / -1e9
    rel_all = rel_ref[...]                                 # (DIM_HEAD, M, M)

    # ---------------- self-attention with Shaw relative position bias ----------
    q  = jnp.dot(x, wq_ref[...],  preferred_element_type=jnp.float32)   # (M, INNER)
    kv = jnp.dot(x, wkv_ref[...], preferred_element_type=jnp.float32)   # (M, 2*INNER)
    k = kv[:, :INNER]
    v = kv[:, INNER:]
    qT = q.T                                               # (INNER, M) - shared transpose
    kT = k.T                                               # (INNER, M)

    heads = []
    for h in range(HEADS):
        sl = slice(h * DIM_HEAD, (h + 1) * DIM_HEAD)
        qh, vh = q[:, sl], v[:, sl]                        # (M, dh)
        dots = jnp.dot(qh, kT[sl, :], preferred_element_type=jnp.float32)  # (M, M)
        # pos[n, r] = sum_d q[n, d] * rel[d, n, r]  (one fused broadcast-reduce)
        pos = jnp.sum(rel_all * qT[sl, :][:, :, None], axis=0)             # (M, M)
        logits = (dots + pos) * SCALE + mask_bias
        logits = logits - jnp.max(logits, axis=-1, keepdims=True)
        e = jnp.exp(logits)
        p = e * pl.reciprocal(jnp.sum(e, axis=-1, keepdims=True), approx=True)
        heads.append(jnp.dot(p, vh, preferred_element_type=jnp.float32))   # (M, dh)

    attn = jnp.concatenate(heads, axis=-1)                 # (M, INNER)
    attn_out = jnp.dot(attn, wo_ref[...],
                       preferred_element_type=jnp.float32) + bo_ref[...]
    res1 = attn_out + x                                    # residual 1, (M, D)

    # -------------------------- ConformerConvModule ----------------------------
    mu  = jnp.mean(res1, axis=-1, keepdims=True)
    var = jnp.mean((res1 - mu) ** 2, axis=-1, keepdims=True)
    yn  = (res1 - mu) * lax.rsqrt(var + LN_EPS) * lng_ref[...] + lnb_ref[...]

    z = jnp.dot(yn, w1_ref[...], preferred_element_type=jnp.float32) + b1_ref[...]
    g = z[:, :CONV_INNER] * jax.nn.sigmoid(z[:, CONV_INNER:])            # GLU, (M, C)

    # depthwise conv1d (k=3, same padding, batch-aware) via one stacked shift matmul
    shifted = jnp.dot(sshift_ref[...], g, preferred_element_type=jnp.float32)  # (2M, C)
    g_prev = shifted[:M, :]
    g_next = shifted[M:, :]
    dww = dww_ref[...]                                     # (3, C)
    dw = g_prev * dww[0:1, :] + g * dww[1:2, :] + g_next * dww[2:3, :] + dwb_ref[...]

    bn = dw * bns_ref[...] + bnb_ref[...]                  # eval-mode BatchNorm1d
    sw = bn * jax.nn.sigmoid(bn)                           # Swish
    conv_out = jnp.dot(sw, w2_ref[...], preferred_element_type=jnp.float32) + b2_ref[...]
    res2 = conv_out + res1                                 # residual 2, (M, D)

    # ------------------------ mean-pool + classifier head ----------------------
    pooled = jnp.dot(pool_ref[...], res2, preferred_element_type=jnp.float32)  # (B, D)
    out_ref[...] = (jnp.dot(pooled, wfc_ref[...],
                            preferred_element_type=jnp.float32)
                    + bfc_ref[...]).astype(out_ref.dtype)


# --------------------------------- wrapper ---------------------------------------
def context_conformer(src, params):
    """src: (B, N, D) float32 -> logits (B, NUM_LABELS)."""
    Bsz, n, d = src.shape
    M = Bsz * n

    # rel-pos gather (embedding lookup) stays in plain JAX glue, then tiled
    # block-diagonally so a single flattened attention sees the right bias.
    seq = jnp.arange(n)
    dist = jnp.clip(seq[:, None] - seq[None, :], -MAX_POS_EMB, MAX_POS_EMB) + MAX_POS_EMB
    rel = params["rel_table"][dist]                         # (n, n, DIM_HEAD)
    rel_dnn = jnp.transpose(rel, (2, 0, 1))                 # (DIM_HEAD, n, n)
    rel_big = jnp.zeros((DIM_HEAD, M, M), jnp.float32)
    for b in range(Bsz):
        rel_big = rel_big.at[:, b * n:(b + 1) * n, b * n:(b + 1) * n].set(rel_dnn)

    # block-diagonal attention mask: batches stay independent after flattening
    bid = jnp.arange(M) // n
    mask_bias = jnp.where(bid[:, None] == bid[None, :], 0.0, -1e9).astype(jnp.float32)

    # batch-aware shift matrices for the k=3 depthwise conv (zero at batch edges)
    ii = jnp.arange(M)[:, None]
    jj = jnp.arange(M)[None, :]
    same = (ii // n) == (jj // n)
    s_prev = ((jj == ii - 1) & same).astype(jnp.float32)    # row i selects g[i-1]
    s_next = ((jj == ii + 1) & same).astype(jnp.float32)    # row i selects g[i+1]
    s_shift = jnp.concatenate([s_prev, s_next], axis=0)     # (2M, M), one MXU push

    # per-batch mean-pool matrix: pooled = pool @ res2
    pool = jnp.where(bid[None, :] == jnp.arange(Bsz)[:, None], 1.0 / n, 0.0
                     ).astype(jnp.float32)                  # (B, M)

    x_flat = src.reshape(M, d)

    r2 = lambda a: a.reshape(1, -1)                         # biases / scales as (1, dim)
    inputs = [
        x_flat, mask_bias, rel_big, s_shift, pool,
        params["wq"], params["wkv"], params["wo"], r2(params["bo"]),
        r2(params["lng"]), r2(params["lnb"]),
        params["w1"], r2(params["b1"]),
        params["dww"], r2(params["dwb"]),
        r2(params["bns"]), r2(params["bnb"]),
        params["w2"], r2(params["b2"]),
        params["wfc"], r2(params["bfc"]),
    ]

    def full_spec(a):
        nd = a.ndim
        return pl.BlockSpec(a.shape, lambda _i, nd=nd: (0,) * nd)

    return pl.pallas_call(
        context_conformer_kernel,
        out_shape=jax.ShapeDtypeStruct((Bsz, NUM_LABELS), jnp.float32),
        grid=(1,),                                          # single invocation
        in_specs=[full_spec(a) for a in inputs],
        out_specs=pl.BlockSpec((Bsz, NUM_LABELS), lambda _i: (0, 0)),
        compiler_params=pltpu.CompilerParams(dimension_semantics=("arbitrary",)),
    )(*inputs)


# ------------------------ deterministic synthetic params -------------------------
def init_params(key):
    ks = jax.random.split(key, 17)
    s = 0.1
    bn_gamma = 1.0 + s * jax.random.normal(ks[11], (CONV_INNER,), jnp.float32)
    bn_beta  = s * jax.random.normal(ks[12], (CONV_INNER,), jnp.float32)
    bn_mean  = jnp.zeros((CONV_INNER,), jnp.float32)   # eval-mode running stats
    bn_var   = jnp.ones((CONV_INNER,), jnp.float32)
    bns = bn_gamma / jnp.sqrt(bn_var + BN_EPS)
    bnb = bn_beta - bn_mean * bns
    return dict(
        rel_table=s * jax.random.normal(ks[0], (2 * MAX_POS_EMB + 1, DIM_HEAD), jnp.float32),
        wq =s * jax.random.normal(ks[1], (INPUT_DIM, INNER), jnp.float32),
        wkv=s * jax.random.normal(ks[2], (INPUT_DIM, 2 * INNER), jnp.float32),
        wo =s * jax.random.normal(ks[3], (INNER, INPUT_DIM), jnp.float32),
        bo =s * jax.random.normal(ks[4], (INPUT_DIM,), jnp.float32),
        lng=1.0 + s * jax.random.normal(ks[5], (INPUT_DIM,), jnp.float32),
        lnb=s * jax.random.normal(ks[6], (INPUT_DIM,), jnp.float32),
        w1 =s * jax.random.normal(ks[7], (INPUT_DIM, 2 * CONV_INNER), jnp.float32),
        b1 =s * jax.random.normal(ks[8], (2 * CONV_INNER,), jnp.float32),
        dww=s * jax.random.normal(ks[9], (KERNEL_SIZE, CONV_INNER), jnp.float32),
        dwb=s * jax.random.normal(ks[10], (CONV_INNER,), jnp.float32),
        bns=bns, bnb=bnb,
        w2 =s * jax.random.normal(ks[13], (CONV_INNER, INPUT_DIM), jnp.float32),
        b2 =s * jax.random.normal(ks[14], (INPUT_DIM,), jnp.float32),
        wfc=s * jax.random.normal(ks[15], (INPUT_DIM, NUM_LABELS), jnp.float32),
        bfc=s * jax.random.normal(ks[16], (NUM_LABELS,), jnp.float32),
    )


# ------------------------------- pure-JAX reference ------------------------------
def reference(src, p):
    bsz, n, d = src.shape
    q  = src @ p["wq"]
    kv = src @ p["wkv"]
    k, v = kv[..., :INNER], kv[..., INNER:]
    sh = lambda t: t.reshape(bsz, n, HEADS, DIM_HEAD).transpose(0, 2, 1, 3)
    qh, kh, vh = sh(q), sh(k), sh(v)
    dots = jnp.einsum("bhid,bhjd->bhij", qh, kh) * SCALE
    seq = jnp.arange(n)
    dist = jnp.clip(seq[:, None] - seq[None, :], -MAX_POS_EMB, MAX_POS_EMB) + MAX_POS_EMB
    rel = p["rel_table"][dist]
    pos = jnp.einsum("bhnd,nrd->bhnr", qh, rel) * SCALE
    attn = jax.nn.softmax(dots + pos, axis=-1)
    o = jnp.einsum("bhij,bhjd->bhid", attn, vh).transpose(0, 2, 1, 3).reshape(bsz, n, INNER)
    o = o @ p["wo"] + p["bo"]
    res1 = o + src
    mu = res1.mean(-1, keepdims=True)
    var = ((res1 - mu) ** 2).mean(-1, keepdims=True)
    yn = (res1 - mu) / jnp.sqrt(var + LN_EPS) * p["lng"] + p["lnb"]
    z = yn @ p["w1"] + p["b1"]
    g = z[..., :CONV_INNER] * jax.nn.sigmoid(z[..., CONV_INNER:])
    gp = jnp.pad(g, ((0, 0), (1, 1), (0, 0)))
    dw = gp[:, :-2] * p["dww"][0] + gp[:, 1:-1] * p["dww"][1] + gp[:, 2:] * p["dww"][2] + p["dwb"]
    bn = dw * p["bns"] + p["bnb"]
    sw = bn * jax.nn.sigmoid(bn)
    conv_out = sw @ p["w2"] + p["b2"]
    res2 = conv_out + res1
    pooled = res2.mean(1)
    return pooled @ p["wfc"] + p["bfc"]


# ------------------------------------ main ----------------------------------------
if __name__ == "__main__":
    key = jax.random.PRNGKey(0)
    k_x, k_p = jax.random.split(key)
    src = jax.random.normal(k_x, (B, N, INPUT_DIM), jnp.float32)
    params = init_params(k_p)

    out = context_conformer(src, params)
    out = jax.block_until_ready(out)
    assert out.shape == (B, NUM_LABELS), out.shape

    ref = jax.block_until_ready(reference(src, params))
    assert bool(jnp.allclose(out, ref, rtol=1e-2, atol=1e-2)), (out, ref)

    print("KERNEL_OK")
</pallas_src>

<mosaic_0001>
module attributes {stable_mosaic.version = 11 : i64} {
  func.func @context_conformer_kernel(%arg0: i32, %arg1: memref<16x16xf32, #tpu.memory_space<vmem>>, %arg2: memref<16x16xf32, #tpu.memory_space<vmem>>, %arg3: memref<4x16x16xf32, #tpu.memory_space<vmem>>, %arg4: memref<32x16xf32, #tpu.memory_space<vmem>>, %arg5: memref<2x16xf32, #tpu.memory_space<vmem>>, %arg6: memref<16x16xf32, #tpu.memory_space<vmem>>, %arg7: memref<16x32xf32, #tpu.memory_space<vmem>>, %arg8: memref<16x16xf32, #tpu.memory_space<vmem>>, %arg9: memref<1x16xf32, #tpu.memory_space<vmem>>, %arg10: memref<1x16xf32, #tpu.memory_space<vmem>>, %arg11: memref<1x16xf32, #tpu.memory_space<vmem>>, %arg12: memref<16x8xf32, #tpu.memory_space<vmem>>, %arg13: memref<1x8xf32, #tpu.memory_space<vmem>>, %arg14: memref<3x4xf32, #tpu.memory_space<vmem>>, %arg15: memref<1x4xf32, #tpu.memory_space<vmem>>, %arg16: memref<1x4xf32, #tpu.memory_space<vmem>>, %arg17: memref<1x4xf32, #tpu.memory_space<vmem>>, %arg18: memref<4x16xf32, #tpu.memory_space<vmem>>, %arg19: memref<1x16xf32, #tpu.memory_space<vmem>>, %arg20: memref<16x2xf32, #tpu.memory_space<vmem>>, %arg21: memref<1x2xf32, #tpu.memory_space<vmem>>, %arg22: memref<2x2xf32, #tpu.memory_space<vmem>>) attributes {dimension_semantics = [#tpu.dimension_semantics<arbitrary>], iteration_bounds = array<i64: 1>, scalar_prefetch = 0 : i64, scratch_operands = 0 : i64, tpu.core_type = #tpu.core_type<tc>, window_params = [{pipeline_mode = #tpu.pipeline_mode<synchronous>, transform_indices = @transform_0, window_bounds = array<i64: 16, 16>}, {pipeline_mode = #tpu.pipeline_mode<synchronous>, transform_indices = @transform_1, window_bounds = array<i64: 16, 16>}, {pipeline_mode = #tpu.pipeline_mode<synchronous>, transform_indices = @transform_2, window_bounds = array<i64: 4, 16, 16>}, {pipeline_mode = #tpu.pipeline_mode<synchronous>, transform_indices = @transform_3, window_bounds = array<i64: 32, 16>}, {pipeline_mode = #tpu.pipeline_mode<synchronous>, transform_indices = @transform_4, window_bounds = array<i64: 2, 16>}, {pipeline_mode = #tpu.pipeline_mode<synchronous>, transform_indices = @transform_5, window_bounds = array<i64: 16, 16>}, {pipeline_mode = #tpu.pipeline_mode<synchronous>, transform_indices = @transform_6, window_bounds = array<i64: 16, 32>}, {pipeline_mode = #tpu.pipeline_mode<synchronous>, transform_indices = @transform_7, window_bounds = array<i64: 16, 16>}, {pipeline_mode = #tpu.pipeline_mode<synchronous>, transform_indices = @transform_8, window_bounds = array<i64: 1, 16>}, {pipeline_mode = #tpu.pipeline_mode<synchronous>, transform_indices = @transform_9, window_bounds = array<i64: 1, 16>}, {pipeline_mode = #tpu.pipeline_mode<synchronous>, transform_indices = @transform_10, window_bounds = array<i64: 1, 16>}, {pipeline_mode = #tpu.pipeline_mode<synchronous>, transform_indices = @transform_11, window_bounds = array<i64: 16, 8>}, {pipeline_mode = #tpu.pipeline_mode<synchronous>, transform_indices = @transform_12, window_bounds = array<i64: 1, 8>}, {pipeline_mode = #tpu.pipeline_mode<synchronous>, transform_indices = @transform_13, window_bounds = array<i64: 3, 4>}, {pipeline_mode = #tpu.pipeline_mode<synchronous>, transform_indices = @transform_14, window_bounds = array<i64: 1, 4>}, {pipeline_mode = #tpu.pipeline_mode<synchronous>, transform_indices = @transform_15, window_bounds = array<i64: 1, 4>}, {pipeline_mode = #tpu.pipeline_mode<synchronous>, transform_indices = @transform_16, window_bounds = array<i64: 1, 4>}, {pipeline_mode = #tpu.pipeline_mode<synchronous>, transform_indices = @transform_17, window_bounds = array<i64: 4, 16>}, {pipeline_mode = #tpu.pipeline_mode<synchronous>, transform_indices = @transform_18, window_bounds = array<i64: 1, 16>}, {pipeline_mode = #tpu.pipeline_mode<synchronous>, transform_indices = @transform_19, window_bounds = array<i64: 16, 2>}, {pipeline_mode = #tpu.pipeline_mode<synchronous>, transform_indices = @transform_20, window_bounds = array<i64: 1, 2>}, {pipeline_mode = #tpu.pipeline_mode<synchronous>, transform_indices = @transform_21, window_bounds = array<i64: 2, 2>}]} {
    %c0 = arith.constant 0 : index
    %c0_0 = arith.constant 0 : index
    %0 = vector.load %arg1[%c0, %c0_0] : memref<16x16xf32, #tpu.memory_space<vmem>>, vector<16x16xf32>
    %c0_1 = arith.constant 0 : index
    %c0_2 = arith.constant 0 : index
    %1 = vector.load %arg2[%c0_1, %c0_2] : memref<16x16xf32, #tpu.memory_space<vmem>>, vector<16x16xf32>
    %c0_3 = arith.constant 0 : index
    %c0_4 = arith.constant 0 : index
    %c0_5 = arith.constant 0 : index
    %2 = vector.load %arg3[%c0_3, %c0_4, %c0_5] : memref<4x16x16xf32, #tpu.memory_space<vmem>>, vector<4x16x16xf32>
    %c0_6 = arith.constant 0 : index
    %c0_7 = arith.constant 0 : index
    %3 = vector.load %arg6[%c0_6, %c0_7] : memref<16x16xf32, #tpu.memory_space<vmem>>, vector<16x16xf32>
    %cst = arith.constant dense<0.000000e+00> : vector<16x16xf32>
    %4 = tpu.matmul %0, %3, %cst {dimension_numbers = #tpu.dot_dimension_numbers<[1], [0], [0], [1], [0, 0, 1, 1], [], []>} : vector<16x16xf32>, vector<16x16xf32>, vector<16x16xf32> -> vector<16x16xf32>
    %c0_8 = arith.constant 0 : index
    %c0_9 = arith.constant 0 : index
    %5 = vector.load %arg7[%c0_8, %c0_9] : memref<16x32xf32, #tpu.memory_space<vmem>>, vector<16x32xf32>
    %cst_10 = arith.constant dense<0.000000e+00> : vector<16x32xf32>
    %6 = tpu.matmul %0, %5, %cst_10 {dimension_numbers = #tpu.dot_dimension_numbers<[1], [0], [0], [1], [0, 0, 1, 1], [], []>} : vector<16x16xf32>, vector<16x32xf32>, vector<16x32xf32> -> vector<16x32xf32>
    %7 = vector.extract_strided_slice %6 {offsets = [0, 0], sizes = [16, 16], strides = [1, 1]} : vector<16x32xf32> to vector<16x16xf32>
    %8 = vector.extract_strided_slice %6 {offsets = [0, 16], sizes = [16, 16], strides = [1, 1]} : vector<16x32xf32> to vector<16x16xf32>
    %9 = tpu.transpose %4, [1, 0] : vector<16x16xf32> -> vector<16x16xf32>
    %10 = tpu.transpose %7, [1, 0] : vector<16x16xf32> -> vector<16x16xf32>
    %11 = vector.extract_strided_slice %4 {offsets = [0, 0], sizes = [16, 4], strides = [1, 1]} : vector<16x16xf32> to vector<16x4xf32>
    %12 = vector.extract_strided_slice %8 {offsets = [0, 0], sizes = [16, 4], strides = [1, 1]} : vector<16x16xf32> to vector<16x4xf32>
    %13 = vector.extract_strided_slice %10 {offsets = [0, 0], sizes = [4, 16], strides = [1, 1]} : vector<16x16xf32> to vector<4x16xf32>
    %cst_11 = arith.constant dense<0.000000e+00> : vector<16x16xf32>
    %14 = tpu.matmul %11, %13, %cst_11 {dimension_numbers = #tpu.dot_dimension_numbers<[1], [0], [0], [1], [0, 0, 1, 1], [], []>} : vector<16x4xf32>, vector<4x16xf32>, vector<16x16xf32> -> vector<16x16xf32>
    %15 = vector.extract_strided_slice %9 {offsets = [0, 0], sizes = [4, 16], strides = [1, 1]} : vector<16x16xf32> to vector<4x16xf32>
    %16 = vector.shape_cast %15 : vector<4x16xf32> to vector<4x16x1xf32>
    %17 = vector.broadcast %16 : vector<4x16x1xf32> to vector<4x16x16xf32>
    %18 = arith.mulf %2, %17 : vector<4x16x16xf32>
    %cst_12 = arith.constant dense<0.000000e+00> : vector<16x16xf32>
    %19 = vector.multi_reduction <add>, %18, %cst_12 [0] : vector<4x16x16xf32> to vector<16x16xf32>
    %20 = arith.addf %14, %19 : vector<16x16xf32>
    %cst_13 = arith.constant 5.000000e-01 : f32
    %21 = vector.broadcast %cst_13 : f32 to vector<16x16xf32>
    %22 = arith.mulf %20, %21 : vector<16x16xf32>
    %23 = arith.addf %22, %1 : vector<16x16xf32>
    %cst_14 = arith.constant dense<0xFF800000> : vector<16xf32>
    %24 = vector.multi_reduction <maximumf>, %23, %cst_14 [1] : vector<16x16xf32> to vector<16xf32>
    %25 = vector.shape_cast %24 : vector<16xf32> to vector<16x1xf32>
    %26 = vector.broadcast %25 : vector<16x1xf32> to vector<16x16xf32>
    %27 = arith.subf %23, %26 : vector<16x16xf32>
    %28 = math.exp %27 : vector<16x16xf32>
    %cst_15 = arith.constant dense<0.000000e+00> : vector<16xf32>
    %29 = vector.multi_reduction <add>, %28, %cst_15 [1] : vector<16x16xf32> to vector<16xf32>
    %30 = vector.shape_cast %29 : vector<16xf32> to vector<16x1xf32>
    %31 = tpu.reciprocal %30 {approx = true} : vector<16x1xf32> -> vector<16x1xf32>
    %32 = vector.broadcast %31 : vector<16x1xf32> to vector<16x16xf32>
    %33 = arith.mulf %28, %32 : vector<16x16xf32>
    %cst_16 = arith.constant dense<0.000000e+00> : vector<16x4xf32>
    %34 = tpu.matmul %33, %12, %cst_16 {dimension_numbers = #tpu.dot_dimension_numbers<[1], [0], [0], [1], [0, 0, 1, 1], [], []>} : vector<16x16xf32>, vector<16x4xf32>, vector<16x4xf32> -> vector<16x4xf32>
    %35 = vector.extract_strided_slice %4 {offsets = [0, 4], sizes = [16, 4], strides = [1, 1]} : vector<16x16xf32> to vector<16x4xf32>
    %36 = vector.extract_strided_slice %8 {offsets = [0, 4], sizes = [16, 4], strides = [1, 1]} : vector<16x16xf32> to vector<16x4xf32>
    %37 = vector.extract_strided_slice %10 {offsets = [4, 0], sizes = [4, 16], strides = [1, 1]} : vector<16x16xf32> to vector<4x16xf32>
    %cst_17 = arith.constant dense<0.000000e+00> : vector<16x16xf32>
    %38 = tpu.matmul %35, %37, %cst_17 {dimension_numbers = #tpu.dot_dimension_numbers<[1], [0], [0], [1], [0, 0, 1, 1], [], []>} : vector<16x4xf32>, vector<4x16xf32>, vector<16x16xf32> -> vector<16x16xf32>
    %39 = vector.extract_strided_slice %9 {offsets = [4, 0], sizes = [4, 16], strides = [1, 1]} : vector<16x16xf32> to vector<4x16xf32>
    %40 = vector.shape_cast %39 : vector<4x16xf32> to vector<4x16x1xf32>
    %41 = vector.broadcast %40 : vector<4x16x1xf32> to vector<4x16x16xf32>
    %42 = arith.mulf %2, %41 : vector<4x16x16xf32>
    %cst_18 = arith.constant dense<0.000000e+00> : vector<16x16xf32>
    %43 = vector.multi_reduction <add>, %42, %cst_18 [0] : vector<4x16x16xf32> to vector<16x16xf32>
    %44 = arith.addf %38, %43 : vector<16x16xf32>
    %cst_19 = arith.constant 5.000000e-01 : f32
    %45 = vector.broadcast %cst_19 : f32 to vector<16x16xf32>
    %46 = arith.mulf %44, %45 : vector<16x16xf32>
    %47 = arith.addf %46, %1 : vector<16x16xf32>
    %cst_20 = arith.constant dense<0xFF800000> : vector<16xf32>
    %48 = vector.multi_reduction <maximumf>, %47, %cst_20 [1] : vector<16x16xf32> to vector<16xf32>
    %49 = vector.shape_cast %48 : vector<16xf32> to vector<16x1xf32>
    %50 = vector.broadcast %49 : vector<16x1xf32> to vector<16x16xf32>
    %51 = arith.subf %47, %50 : vector<16x16xf32>
    %52 = math.exp %51 : vector<16x16xf32>
    %cst_21 = arith.constant dense<0.000000e+00> : vector<16xf32>
    %53 = vector.multi_reduction <add>, %52, %cst_21 [1] : vector<16x16xf32> to vector<16xf32>
    %54 = vector.shape_cast %53 : vector<16xf32> to vector<16x1xf32>
    %55 = tpu.reciprocal %54 {approx = true} : vector<16x1xf32> -> vector<16x1xf32>
    %56 = vector.broadcast %55 : vector<16x1xf32> to vector<16x16xf32>
    %57 = arith.mulf %52, %56 : vector<16x16xf32>
    %cst_22 = arith.constant dense<0.000000e+00> : vector<16x4xf32>
    %58 = tpu.matmul %57, %36, %cst_22 {dimension_numbers = #tpu.dot_dimension_numbers<[1], [0], [0], [1], [0, 0, 1, 1], [], []>} : vector<16x16xf32>, vector<16x4xf32>, vector<16x4xf32> -> vector<16x4xf32>
    %59 = vector.extract_strided_slice %4 {offsets = [0, 8], sizes = [16, 4], strides = [1, 1]} : vector<16x16xf32> to vector<16x4xf32>
    %60 = vector.extract_strided_slice %8 {offsets = [0, 8], sizes = [16, 4], strides = [1, 1]} : vector<16x16xf32> to vector<16x4xf32>
    %61 = vector.extract_strided_slice %10 {offsets = [8, 0], sizes = [4, 16], strides = [1, 1]} : vector<16x16xf32> to vector<4x16xf32>
    %cst_23 = arith.constant dense<0.000000e+00> : vector<16x16xf32>
    %62 = tpu.matmul %59, %61, %cst_23 {dimension_numbers = #tpu.dot_dimension_numbers<[1], [0], [0], [1], [0, 0, 1, 1], [], []>} : vector<16x4xf32>, vector<4x16xf32>, vector<16x16xf32> -> vector<16x16xf32>
    %63 = vector.extract_strided_slice %9 {offsets = [8, 0], sizes = [4, 16], strides = [1, 1]} : vector<16x16xf32> to vector<4x16xf32>
    %64 = vector.shape_cast %63 : vector<4x16xf32> to vector<4x16x1xf32>
    %65 = vector.broadcast %64 : vector<4x16x1xf32> to vector<4x16x16xf32>
    %66 = arith.mulf %2, %65 : vector<4x16x16xf32>
    %cst_24 = arith.constant dense<0.000000e+00> : vector<16x16xf32>
    %67 = vector.multi_reduction <add>, %66, %cst_24 [0] : vector<4x16x16xf32> to vector<16x16xf32>
    %68 = arith.addf %62, %67 : vector<16x16xf32>
    %cst_25 = arith.constant 5.000000e-01 : f32
    %69 = vector.broadcast %cst_25 : f32 to vector<16x16xf32>
    %70 = arith.mulf %68, %69 : vector<16x16xf32>
    %71 = arith.addf %70, %1 : vector<16x16xf32>
    %cst_26 = arith.constant dense<0xFF800000> : vector<16xf32>
    %72 = vector.multi_reduction <maximumf>, %71, %cst_26 [1] : vector<16x16xf32> to vector<16xf32>
    %73 = vector.shape_cast %72 : vector<16xf32> to vector<16x1xf32>
    %74 = vector.broadcast %73 : vector<16x1xf32> to vector<16x16xf32>
    %75 = arith.subf %71, %74 : vector<16x16xf32>
    %76 = math.exp %75 : vector<16x16xf32>
    %cst_27 = arith.constant dense<0.000000e+00> : vector<16xf32>
    %77 = vector.multi_reduction <add>, %76, %cst_27 [1] : vector<16x16xf32> to vector<16xf32>
    %78 = vector.shape_cast %77 : vector<16xf32> to vector<16x1xf32>
    %79 = tpu.reciprocal %78 {approx = true} : vector<16x1xf32> -> vector<16x1xf32>
    %80 = vector.broadcast %79 : vector<16x1xf32> to vector<16x16xf32>
    %81 = arith.mulf %76, %80 : vector<16x16xf32>
    %cst_28 = arith.constant dense<0.000000e+00> : vector<16x4xf32>
    %82 = tpu.matmul %81, %60, %cst_28 {dimension_numbers = #tpu.dot_dimension_numbers<[1], [0], [0], [1], [0, 0, 1, 1], [], []>} : vector<16x16xf32>, vector<16x4xf32>, vector<16x4xf32> -> vector<16x4xf32>
    %83 = vector.extract_strided_slice %4 {offsets = [0, 12], sizes = [16, 4], strides = [1, 1]} : vector<16x16xf32> to vector<16x4xf32>
    %84 = vector.extract_strided_slice %8 {offsets = [0, 12], sizes = [16, 4], strides = [1, 1]} : vector<16x16xf32> to vector<16x4xf32>
    %85 = vector.extract_strided_slice %10 {offsets = [12, 0], sizes = [4, 16], strides = [1, 1]} : vector<16x16xf32> to vector<4x16xf32>
    %cst_29 = arith.constant dense<0.000000e+00> : vector<16x16xf32>
    %86 = tpu.matmul %83, %85, %cst_29 {dimension_numbers = #tpu.dot_dimension_numbers<[1], [0], [0], [1], [0, 0, 1, 1], [], []>} : vector<16x4xf32>, vector<4x16xf32>, vector<16x16xf32> -> vector<16x16xf32>
    %87 = vector.extract_strided_slice %9 {offsets = [12, 0], sizes = [4, 16], strides = [1, 1]} : vector<16x16xf32> to vector<4x16xf32>
    %88 = vector.shape_cast %87 : vector<4x16xf32> to vector<4x16x1xf32>
    %89 = vector.broadcast %88 : vector<4x16x1xf32> to vector<4x16x16xf32>
    %90 = arith.mulf %2, %89 : vector<4x16x16xf32>
    %cst_30 = arith.constant dense<0.000000e+00> : vector<16x16xf32>
    %91 = vector.multi_reduction <add>, %90, %cst_30 [0] : vector<4x16x16xf32> to vector<16x16xf32>
    %92 = arith.addf %86, %91 : vector<16x16xf32>
    %cst_31 = arith.constant 5.000000e-01 : f32
    %93 = vector.broadcast %cst_31 : f32 to vector<16x16xf32>
    %94 = arith.mulf %92, %93 : vector<16x16xf32>
    %95 = arith.addf %94, %1 : vector<16x16xf32>
    %cst_32 = arith.constant dense<0xFF800000> : vector<16xf32>
    %96 = vector.multi_reduction <maximumf>, %95, %cst_32 [1] : vector<16x16xf32> to vector<16xf32>
    %97 = vector.shape_cast %96 : vector<16xf32> to vector<16x1xf32>
    %98 = vector.broadcast %97 : vector<16x1xf32> to vector<16x16xf32>
    %99 = arith.subf %95, %98 : vector<16x16xf32>
    %100 = math.exp %99 : vector<16x16xf32>
    %cst_33 = arith.constant dense<0.000000e+00> : vector<16xf32>
    %101 = vector.multi_reduction <add>, %100, %cst_33 [1] : vector<16x16xf32> to vector<16xf32>
    %102 = vector.shape_cast %101 : vector<16xf32> to vector<16x1xf32>
    %103 = tpu.reciprocal %102 {approx = true} : vector<16x1xf32> -> vector<16x1xf32>
    %104 = vector.broadcast %103 : vector<16x1xf32> to vector<16x16xf32>
    %105 = arith.mulf %100, %104 : vector<16x16xf32>
    %cst_34 = arith.constant dense<0.000000e+00> : vector<16x4xf32>
    %106 = tpu.matmul %105, %84, %cst_34 {dimension_numbers = #tpu.dot_dimension_numbers<[1], [0], [0], [1], [0, 0, 1, 1], [], []>} : vector<16x16xf32>, vector<16x4xf32>, vector<16x4xf32> -> vector<16x4xf32>
    %107 = tpu.concatenate %34, %58, %82, %106 in 1 : vector<16x4xf32>, vector<16x4xf32>, vector<16x4xf32>, vector<16x4xf32> -> vector<16x16xf32>
    %c0_35 = arith.constant 0 : index
    %c0_36 = arith.constant 0 : index
    %108 = vector.load %arg8[%c0_35, %c0_36] : memref<16x16xf32, #tpu.memory_space<vmem>>, vector<16x16xf32>
    %cst_37 = arith.constant dense<0.000000e+00> : vector<16x16xf32>
    %109 = tpu.matmul %107, %108, %cst_37 {dimension_numbers = #tpu.dot_dimension_numbers<[1], [0], [0], [1], [0, 0, 1, 1], [], []>} : vector<16x16xf32>, vector<16x16xf32>, vector<16x16xf32> -> vector<16x16xf32>
    %c0_38 = arith.constant 0 : index
    %c0_39 = arith.constant 0 : index
    %110 = vector.load %arg9[%c0_38, %c0_39] : memref<1x16xf32, #tpu.memory_space<vmem>>, vector<1x16xf32>
    %111 = vector.broadcast %110 : vector<1x16xf32> to vector<16x16xf32>
    %112 = arith.addf %109, %111 : vector<16x16xf32>
    %113 = arith.addf %112, %0 : vector<16x16xf32>
    %cst_40 = arith.constant dense<0.000000e+00> : vector<16xf32>
    %114 = vector.multi_reduction <add>, %113, %cst_40 [1] : vector<16x16xf32> to vector<16xf32>
    %115 = vector.shape_cast %114 : vector<16xf32> to vector<16x1xf32>
    %cst_41 = arith.constant 1.600000e+01 : f32
    %116 = vector.broadcast %cst_41 : f32 to vector<16x1xf32>
    %117 = arith.divf %115, %116 : vector<16x1xf32>
    %118 = vector.broadcast %117 : vector<16x1xf32> to vector<16x16xf32>
    %119 = arith.subf %113, %118 : vector<16x16xf32>
    %120 = arith.mulf %119, %119 : vector<16x16xf32>
    %cst_42 = arith.constant dense<0.000000e+00> : vector<16xf32>
    %121 = vector.multi_reduction <add>, %120, %cst_42 [1] : vector<16x16xf32> to vector<16xf32>
    %122 = vector.shape_cast %121 : vector<16xf32> to vector<16x1xf32>
    %cst_43 = arith.constant 1.600000e+01 : f32
    %123 = vector.broadcast %cst_43 : f32 to vector<16x1xf32>
    %124 = arith.divf %122, %123 : vector<16x1xf32>
    %125 = vector.broadcast %117 : vector<16x1xf32> to vector<16x16xf32>
    %126 = arith.subf %113, %125 : vector<16x16xf32>
    %cst_44 = arith.constant 9.99999974E-6 : f32
    %127 = vector.broadcast %cst_44 : f32 to vector<16x1xf32>
    %128 = arith.addf %124, %127 : vector<16x1xf32>
    %129 = math.rsqrt %128 : vector<16x1xf32>
    %130 = vector.broadcast %129 : vector<16x1xf32> to vector<16x16xf32>
    %131 = arith.mulf %126, %130 : vector<16x16xf32>
    %c0_45 = arith.constant 0 : index
    %c0_46 = arith.constant 0 : index
    %132 = vector.load %arg10[%c0_45, %c0_46] : memref<1x16xf32, #tpu.memory_space<vmem>>, vector<1x16xf32>
    %133 = vector.broadcast %132 : vector<1x16xf32> to vector<16x16xf32>
    %134 = arith.mulf %131, %133 : vector<16x16xf32>
    %c0_47 = arith.constant 0 : index
    %c0_48 = arith.constant 0 : index
    %135 = vector.load %arg11[%c0_47, %c0_48] : memref<1x16xf32, #tpu.memory_space<vmem>>, vector<1x16xf32>
    %136 = vector.broadcast %135 : vector<1x16xf32> to vector<16x16xf32>
    %137 = arith.addf %134, %136 : vector<16x16xf32>
    %c0_49 = arith.constant 0 : index
    %c0_50 = arith.constant 0 : index
    %138 = vector.load %arg12[%c0_49, %c0_50] : memref<16x8xf32, #tpu.memory_space<vmem>>, vector<16x8xf32>
    %cst_51 = arith.constant dense<0.000000e+00> : vector<16x8xf32>
    %139 = tpu.matmul %137, %138, %cst_51 {dimension_numbers = #tpu.dot_dimension_numbers<[1], [0], [0], [1], [0, 0, 1, 1], [], []>} : vector<16x16xf32>, vector<16x8xf32>, vector<16x8xf32> -> vector<16x8xf32>
    %c0_52 = arith.constant 0 : index
    %c0_53 = arith.constant 0 : index
    %140 = vector.load %arg13[%c0_52, %c0_53] : memref<1x8xf32, #tpu.memory_space<vmem>>, vector<1x8xf32>
    %141 = vector.broadcast %140 : vector<1x8xf32> to vector<16x8xf32>
    %142 = arith.addf %139, %141 : vector<16x8xf32>
    %143 = vector.extract_strided_slice %142 {offsets = [0, 0], sizes = [16, 4], strides = [1, 1]} : vector<16x8xf32> to vector<16x4xf32>
    %144 = vector.extract_strided_slice %142 {offsets = [0, 4], sizes = [16, 4], strides = [1, 1]} : vector<16x8xf32> to vector<16x4xf32>
    %145 = arith.negf %144 : vector<16x4xf32>
    %146 = math.exp %145 : vector<16x4xf32>
    %cst_54 = arith.constant 1.000000e+00 : f32
    %147 = vector.broadcast %cst_54 : f32 to vector<16x4xf32>
    %148 = arith.addf %147, %146 : vector<16x4xf32>
    %149 = arith.divf %147, %148 : vector<16x4xf32>
    %150 = arith.mulf %143, %149 : vector<16x4xf32>
    %c0_55 = arith.constant 0 : index
    %c0_56 = arith.constant 0 : index
    %151 = vector.load %arg4[%c0_55, %c0_56] : memref<32x16xf32, #tpu.memory_space<vmem>>, vector<32x16xf32>
    %cst_57 = arith.constant dense<0.000000e+00> : vector<32x4xf32>
    %152 = tpu.matmul %151, %150, %cst_57 {dimension_numbers = #tpu.dot_dimension_numbers<[1], [0], [0], [1], [0, 0, 1, 1], [], []>} : vector<32x16xf32>, vector<16x4xf32>, vector<32x4xf32> -> vector<32x4xf32>
    %153 = vector.extract_strided_slice %152 {offsets = [0, 0], sizes = [16, 4], strides = [1, 1]} : vector<32x4xf32> to vector<16x4xf32>
    %154 = vector.extract_strided_slice %152 {offsets = [16, 0], sizes = [16, 4], strides = [1, 1]} : vector<32x4xf32> to vector<16x4xf32>
    %c0_58 = arith.constant 0 : index
    %c0_59 = arith.constant 0 : index
    %155 = vector.load %arg14[%c0_58, %c0_59] : memref<3x4xf32, #tpu.memory_space<vmem>>, vector<3x4xf32>
    %156 = vector.extract_strided_slice %155 {offsets = [0, 0], sizes = [1, 4], strides = [1, 1]} : vector<3x4xf32> to vector<1x4xf32>
    %157 = vector.broadcast %156 : vector<1x4xf32> to vector<16x4xf32>
    %158 = arith.mulf %153, %157 : vector<16x4xf32>
    %159 = vector.extract_strided_slice %155 {offsets = [1, 0], sizes = [1, 4], strides = [1, 1]} : vector<3x4xf32> to vector<1x4xf32>
    %160 = vector.broadcast %159 : vector<1x4xf32> to vector<16x4xf32>
    %161 = arith.mulf %150, %160 : vector<16x4xf32>
    %162 = arith.addf %158, %161 : vector<16x4xf32>
    %163 = vector.extract_strided_slice %155 {offsets = [2, 0], sizes = [1, 4], strides = [1, 1]} : vector<3x4xf32> to vector<1x4xf32>
    %164 = vector.broadcast %163 : vector<1x4xf32> to vector<16x4xf32>
    %165 = arith.mulf %154, %164 : vector<16x4xf32>
    %166 = arith.addf %162, %165 : vector<16x4xf32>
    %c0_60 = arith.constant 0 : index
    %c0_61 = arith.constant 0 : index
    %167 = vector.load %arg15[%c0_60, %c0_61] : memref<1x4xf32, #tpu.memory_space<vmem>>, vector<1x4xf32>
    %168 = vector.broadcast %167 : vector<1x4xf32> to vector<16x4xf32>
    %169 = arith.addf %166, %168 : vector<16x4xf32>
    %c0_62 = arith.constant 0 : index
    %c0_63 = arith.constant 0 : index
    %170 = vector.load %arg16[%c0_62, %c0_63] : memref<1x4xf32, #tpu.memory_space<vmem>>, vector<1x4xf32>
    %171 = vector.broadcast %170 : vector<1x4xf32> to vector<16x4xf32>
    %172 = arith.mulf %169, %171 : vector<16x4xf32>
    %c0_64 = arith.constant 0 : index
    %c0_65 = arith.constant 0 : index
    %173 = vector.load %arg17[%c0_64, %c0_65] : memref<1x4xf32, #tpu.memory_space<vmem>>, vector<1x4xf32>
    %174 = vector.broadcast %173 : vector<1x4xf32> to vector<16x4xf32>
    %175 = arith.addf %172, %174 : vector<16x4xf32>
    %176 = arith.negf %175 : vector<16x4xf32>
    %177 = math.exp %176 : vector<16x4xf32>
    %cst_66 = arith.constant 1.000000e+00 : f32
    %178 = vector.broadcast %cst_66 : f32 to vector<16x4xf32>
    %179 = arith.addf %178, %177 : vector<16x4xf32>
    %180 = arith.divf %178, %179 : vector<16x4xf32>
    %181 = arith.mulf %175, %180 : vector<16x4xf32>
    %c0_67 = arith.constant 0 : index
    %c0_68 = arith.constant 0 : index
    %182 = vector.load %arg18[%c0_67, %c0_68] : memref<4x16xf32, #tpu.memory_space<vmem>>, vector<4x16xf32>
    %cst_69 = arith.constant dense<0.000000e+00> : vector<16x16xf32>
    %183 = tpu.matmul %181, %182, %cst_69 {dimension_numbers = #tpu.dot_dimension_numbers<[1], [0], [0], [1], [0, 0, 1, 1], [], []>} : vector<16x4xf32>, vector<4x16xf32>, vector<16x16xf32> -> vector<16x16xf32>
    %c0_70 = arith.constant 0 : index
    %c0_71 = arith.constant 0 : index
    %184 = vector.load %arg19[%c0_70, %c0_71] : memref<1x16xf32, #tpu.memory_space<vmem>>, vector<1x16xf32>
    %185 = vector.broadcast %184 : vector<1x16xf32> to vector<16x16xf32>
    %186 = arith.addf %183, %185 : vector<16x16xf32>
    %187 = arith.addf %186, %113 : vector<16x16xf32>
    %c0_72 = arith.constant 0 : index
    %c0_73 = arith.constant 0 : index
    %188 = vector.load %arg5[%c0_72, %c0_73] : memref<2x16xf32, #tpu.memory_space<vmem>>, vector<2x16xf32>
    %cst_74 = arith.constant dense<0.000000e+00> : vector<2x16xf32>
    %189 = tpu.matmul %188, %187, %cst_74 {dimension_numbers = #tpu.dot_dimension_numbers<[1], [0], [0], [1], [0, 0, 1, 1], [], []>} : vector<2x16xf32>, vector<16x16xf32>, vector<2x16xf32> -> vector<2x16xf32>
    %c0_75 = arith.constant 0 : index
    %c0_76 = arith.constant 0 : index
    %190 = vector.load %arg20[%c0_75, %c0_76] : memref<16x2xf32, #tpu.memory_space<vmem>>, vector<16x2xf32>
    %cst_77 = arith.constant dense<0.000000e+00> : vector<2x2xf32>
    %191 = tpu.matmul %189, %190, %cst_77 {dimension_numbers = #tpu.dot_dimension_numbers<[1], [0], [0], [1], [0, 0, 1, 1], [], []>} : vector<2x16xf32>, vector<16x2xf32>, vector<2x2xf32> -> vector<2x2xf32>
    %c0_78 = arith.constant 0 : index
    %c0_79 = arith.constant 0 : index
    %192 = vector.load %arg21[%c0_78, %c0_79] : memref<1x2xf32, #tpu.memory_space<vmem>>, vector<1x2xf32>
    %193 = vector.broadcast %192 : vector<1x2xf32> to vector<2x2xf32>
    %194 = arith.addf %191, %193 : vector<2x2xf32>
    %c0_80 = arith.constant 0 : index
    %c0_81 = arith.constant 0 : index
    %195 = vector.load %arg22[%c0_80, %c0_81] : memref<2x2xf32, #tpu.memory_space<vmem>>, vector<2x2xf32>
    tpu.vector_store %arg22[%c0_80, %c0_81], %194 {strides = array<i32>} : memref<2x2xf32, #tpu.memory_space<vmem>>, vector<2x2xf32>,
    return
  }
  func.func @transform_0(%arg0: i32) -> (i32, i32) {
    %c0_i32 = arith.constant 0 : i32
    %c0_i32_0 = arith.constant 0 : i32
    %c0_i32_1 = arith.constant 0 : i32
    return %c0_i32, %c0_i32_0 : i32, i32
  }
  func.func @transform_1(%arg0: i32) -> (i32, i32) {
    %c0_i32 = arith.constant 0 : i32
    %c0_i32_0 = arith.constant 0 : i32
    %c0_i32_1 = arith.constant 0 : i32
    return %c0_i32, %c0_i32_0 : i32, i32
  }
  func.func @transform_2(%arg0: i32) -> (i32, i32, i32) {
    %c0_i32 = arith.constant 0 : i32
    %c0_i32_0 = arith.constant 0 : i32
    %c0_i32_1 = arith.constant 0 : i32
    %c0_i32_2 = arith.constant 0 : i32
    return %c0_i32, %c0_i32_0, %c0_i32_1 : i32, i32, i32
  }
  func.func @transform_3(%arg0: i32) -> (i32, i32) {
    %c0_i32 = arith.constant 0 : i32
    %c0_i32_0 = arith.constant 0 : i32
    %c0_i32_1 = arith.constant 0 : i32
    return %c0_i32, %c0_i32_0 : i32, i32
  }
  func.func @transform_4(%arg0: i32) -> (i32, i32) {
    %c0_i32 = arith.constant 0 : i32
    %c0_i32_0 = arith.constant 0 : i32
    %c0_i32_1 = arith.constant 0 : i32
    return %c0_i32, %c0_i32_0 : i32, i32
  }
  func.func @transform_5(%arg0: i32) -> (i32, i32) {
    %c0_i32 = arith.constant 0 : i32
    %c0_i32_0 = arith.constant 0 : i32
    %c0_i32_1 = arith.constant 0 : i32
    return %c0_i32, %c0_i32_0 : i32, i32
  }
  func.func @transform_6(%arg0: i32) -> (i32, i32) {
    %c0_i32 = arith.constant 0 : i32
    %c0_i32_0 = arith.constant 0 : i32
    %c0_i32_1 = arith.constant 0 : i32
    return %c0_i32, %c0_i32_0 : i32, i32
  }
  func.func @transform_7(%arg0: i32) -> (i32, i32) {
    %c0_i32 = arith.constant 0 : i32
    %c0_i32_0 = arith.constant 0 : i32
    %c0_i32_1 = arith.constant 0 : i32
    return %c0_i32, %c0_i32_0 : i32, i32
  }
  func.func @transform_8(%arg0: i32) -> (i32, i32) {
    %c0_i32 = arith.constant 0 : i32
    %c0_i32_0 = arith.constant 0 : i32
    %c0_i32_1 = arith.constant 0 : i32
    return %c0_i32, %c0_i32_0 : i32, i32
  }
  func.func @transform_9(%arg0: i32) -> (i32, i32) {
    %c0_i32 = arith.constant 0 : i32
    %c0_i32_0 = arith.constant 0 : i32
    %c0_i32_1 = arith.constant 0 : i32
    return %c0_i32, %c0_i32_0 : i32, i32
  }
  func.func @transform_10(%arg0: i32) -> (i32, i32) {
    %c0_i32 = arith.constant 0 : i32
    %c0_i32_0 = arith.constant 0 : i32
    %c0_i32_1 = arith.constant 0 : i32
    return %c0_i32, %c0_i32_0 : i32, i32
  }
  func.func @transform_11(%arg0: i32) -> (i32, i32) {
    %c0_i32 = arith.constant 0 : i32
    %c0_i32_0 = arith.constant 0 : i32
    %c0_i32_1 = arith.constant 0 : i32
    return %c0_i32, %c0_i32_0 : i32, i32
  }
  func.func @transform_12(%arg0: i32) -> (i32, i32) {
    %c0_i32 = arith.constant 0 : i32
    %c0_i32_0 = arith.constant 0 : i32
    %c0_i32_1 = arith.constant 0 : i32
    return %c0_i32, %c0_i32_0 : i32, i32
  }
  func.func @transform_13(%arg0: i32) -> (i32, i32) {
    %c0_i32 = arith.constant 0 : i32
    %c0_i32_0 = arith.constant 0 : i32
    %c0_i32_1 = arith.constant 0 : i32
    return %c0_i32, %c0_i32_0 : i32, i32
  }
  func.func @transform_14(%arg0: i32) -> (i32, i32) {
    %c0_i32 = arith.constant 0 : i32
    %c0_i32_0 = arith.constant 0 : i32
    %c0_i32_1 = arith.constant 0 : i32
    return %c0_i32, %c0_i32_0 : i32, i32
  }
  func.func @transform_15(%arg0: i32) -> (i32, i32) {
    %c0_i32 = arith.constant 0 : i32
    %c0_i32_0 = arith.constant 0 : i32
    %c0_i32_1 = arith.constant 0 : i32
    return %c0_i32, %c0_i32_0 : i32, i32
  }
  func.func @transform_16(%arg0: i32) -> (i32, i32) {
    %c0_i32 = arith.constant 0 : i32
    %c0_i32_0 = arith.constant 0 : i32
    %c0_i32_1 = arith.constant 0 : i32
    return %c0_i32, %c0_i32_0 : i32, i32
  }
  func.func @transform_17(%arg0: i32) -> (i32, i32) {
    %c0_i32 = arith.constant 0 : i32
    %c0_i32_0 = arith.constant 0 : i32
    %c0_i32_1 = arith.constant 0 : i32
    return %c0_i32, %c0_i32_0 : i32, i32
  }
  func.func @transform_18(%arg0: i32) -> (i32, i32) {
    %c0_i32 = arith.constant 0 : i32
    %c0_i32_0 = arith.constant 0 : i32
    %c0_i32_1 = arith.constant 0 : i32
    return %c0_i32, %c0_i32_0 : i32, i32
  }
  func.func @transform_19(%arg0: i32) -> (i32, i32) {
    %c0_i32 = arith.constant 0 : i32
    %c0_i32_0 = arith.constant 0 : i32
    %c0_i32_1 = arith.constant 0 : i32
    return %c0_i32, %c0_i32_0 : i32, i32
  }
  func.func @transform_20(%arg0: i32) -> (i32, i32) {
    %c0_i32 = arith.constant 0 : i32
    %c0_i32_0 = arith.constant 0 : i32
    %c0_i32_1 = arith.constant 0 : i32
    return %c0_i32, %c0_i32_0 : i32, i32
  }
  func.func @transform_21(%arg0: i32) -> (i32, i32) {
    %c0_i32 = arith.constant 0 : i32
    %c0_i32_0 = arith.constant 0 : i32
    %c0_i32_1 = arith.constant 0 : i32
    return %c0_i32, %c0_i32_0 : i32, i32
  }
}

</mosaic_0001>

<llo_original>
// kernel: tpu_custom_call.1
$region0: #{tpu_custom_call.1}
  #allocation0 [shape = 'u32[]', space=smem, size = 0x4, offset = 0x4, fixed_abs, tag = 'smem constant byte address 0x4 - core index']
  #allocation1 [shape = 'u32[72,128]{1,0:T(1,128)}', space=vmem, size = 0x9000, scoped, tag = 'internal scratch']
  %s0 = inlined_call_operand.hbm [shape: f32[16,16], index: 0, kind: input, shape index: {}]
  %s1 = inlined_call_operand.hbm [shape: f32[16,16], index: 1, kind: input, shape index: {}]
  %s2 = inlined_call_operand.vmem [shape: f32[4,16,16], index: 2, kind: input, shape index: {}]
  %s3 = inlined_call_operand.vmem [shape: f32[32,16], index: 3, kind: input, shape index: {}]
  %s4 = inlined_call_operand.vmem [shape: f32[2,16], index: 4, kind: input, shape index: {}]
  %s5 = inlined_call_operand.hbm [shape: f32[16,16], index: 5, kind: input, shape index: {}]
  %s6 = inlined_call_operand.hbm [shape: f32[16,32], index: 6, kind: input, shape index: {}]
  %s7 = inlined_call_operand.hbm [shape: f32[16,16], index: 7, kind: input, shape index: {}]
  %s8 = inlined_call_operand.hbm [shape: f32[1,16], index: 8, kind: input, shape index: {}]
  %s9 = inlined_call_operand.hbm [shape: f32[1,16], index: 9, kind: input, shape index: {}]
  %s10 = inlined_call_operand.hbm [shape: f32[1,16], index: 10, kind: input, shape index: {}]
  %s11 = inlined_call_operand.vmem [shape: f32[16,8], index: 11, kind: input, shape index: {}]
  %s12 = inlined_call_operand.vmem [shape: f32[1,8], index: 12, kind: input, shape index: {}]
  %s13 = inlined_call_operand.vmem [shape: f32[3,4], index: 13, kind: input, shape index: {}]
  %s14 = inlined_call_operand.vmem [shape: f32[1,4], index: 14, kind: input, shape index: {}]
  %s15 = inlined_call_operand.vmem [shape: f32[1,4], index: 15, kind: input, shape index: {}]
  %s16 = inlined_call_operand.vmem [shape: f32[1,4], index: 16, kind: input, shape index: {}]
  %s17 = inlined_call_operand.vmem [shape: f32[4,16], index: 17, kind: input, shape index: {}]
  %s18 = inlined_call_operand.vmem [shape: f32[1,16], index: 18, kind: input, shape index: {}]
  %s19 = inlined_call_operand.vmem [shape: f32[16,2], index: 19, kind: input, shape index: {}]
  %s20 = inlined_call_operand.vmem [shape: f32[1,2], index: 20, kind: input, shape index: {}]
  %s21 = inlined_call_operand.hbm [shape: f32[2,2], index: 21, kind: output, shape index: {}]
  %s22 = sld [smem:[#allocation0]]
  $region126: #{tpu_custom_call.1} parent=0
    _
  %s24 = ssub.s32 1, %s22
  %s25 = scalar_select 0, %s24, %s22
  $region1: #{tpu_custom_call.1} parent=0
    #allocation2 [shape = 'u8[8192]{0}', space=vmem, size = 0x2000, scoped, tag = 'input window, operand 0, single buffered']
    #allocation3 [shape = 's32[1]{0}', space=sflag, size = 0x4, scoped, tag = 'scoped memory for tpu_custom_call.1']
    #allocation4 [shape = 's32[1]{0}', space=sflag, size = 0x4, scoped, tag = 'scoped memory for tpu_custom_call.1']
    #allocation5 [shape = 'u8[8192]{0}', space=vmem, size = 0x2000, scoped, tag = 'input window, operand 1, single buffered']
    #allocation6 [shape = 's32[1]{0}', space=sflag, size = 0x4, scoped, tag = 'scoped memory for tpu_custom_call.1']
    #allocation7 [shape = 'u8[8192]{0}', space=vmem, size = 0x2000, scoped, tag = 'input window, operand 5, single buffered']
    #allocation8 [shape = 'u8[8192]{0}', space=vmem, size = 0x2000, scoped, tag = 'input window, operand 6, single buffered']
    #allocation9 [shape = 's32[1]{0}', space=sflag, size = 0x4, scoped, tag = 'scoped memory for tpu_custom_call.1']
    #allocation10 [shape = 'u8[8192]{0}', space=vmem, size = 0x2000, scoped, tag = 'input window, operand 7, single buffered']
    #allocation11 [shape = 'u8[512]{0}', space=vmem, size = 0x400, scoped, tag = 'input window, operand 8, single buffered']
    #allocation12 [shape = 's32[1]{0}', space=sflag, size = 0x4, scoped, tag = 'scoped memory for tpu_custom_call.1']
    #allocation13 [shape = 'u8[512]{0}', space=vmem, size = 0x400, scoped, tag = 'input window, operand 9, single buffered']
    #allocation14 [shape = 'u8[512]{0}', space=vmem, size = 0x400, scoped, tag = 'input window, operand 10, single buffered']
    #allocation15 [shape = 's32[1]{0}', space=sflag, size = 0x4, scoped, tag = 'scoped memory for tpu_custom_call.1']
    #allocation16 [shape = 'u8[1024]{0}', space=vmem, size = 0x400, scoped, tag = 'output window, operand 0, single buffered']
    %26 = vsyncpa [#allocation3], 0
    %27 = vsyncpa [#allocation6], 0
    %28 = vsyncpa [#allocation9], 0
    %29 = vsyncpa [#allocation12], 0
    %30 = vsyncpa [#allocation15], 0
    %31 = vsyncpa [#allocation4], 0
    // Predicated region
    $region2: #{tpu_custom_call.1} parent=1 // pred_check
      _
    $region3: #{tpu_custom_call.1} parent=1 // pred_check_branch
      %33 = sbr.rel (0) target = $region5
    $region4: #{tpu_custom_call.1} parent=1 // pred_region
      %35 = vsyncadd [#allocation3], 0
      %s36 = sshll.u32 %s0, 4
      %s37 = int_to_ptr.hbm [resolvable:$true] %s36
      %s38 = sshll.u32 [#allocation2], 4
      %s39 = int_to_ptr.vmem [resolvable:$true] %s38
      %44 = dma.hbm_to_vmem [thread:$0]  %s37, 256, %s39, [#allocation3], 128, 128, 8
    $region5: #{tpu_custom_call.1} parent=1 // pred_fallthru
      _
    // Predicated region
    $region6: #{tpu_custom_call.1} parent=1 // pred_check
      _
    $region7: #{tpu_custom_call.1} parent=1 // pred_check_branch
      %46 = sbr.rel (0) target = $region9
    $region8: #{tpu_custom_call.1} parent=1 // pred_region
      %48 = vsyncadd [#allocation6], 0
      %s49 = sshll.u32 %s1, 4
      %s50 = int_to_ptr.hbm [resolvable:$true] %s49
      %s51 = sshll.u32 [#allocation5], 4
      %s52 = int_to_ptr.vmem [resolvable:$true] %s51
      %57 = dma.hbm_to_vmem [thread:$0]  %s50, 256, %s52, [#allocation6], 128, 128, 8
    $region9: #{tpu_custom_call.1} parent=1 // pred_fallthru
      _
    // Predicated region
    $region10: #{tpu_custom_call.1} parent=1 // pred_check
      _
    $region11: #{tpu_custom_call.1} parent=1 // pred_check_branch
      %59 = sbr.rel (0) target = $region13
    $region12: #{tpu_custom_call.1} parent=1 // pred_region
      _
    $region13: #{tpu_custom_call.1} parent=1 // pred_fallthru
      _
    // Predicated region
    $region14: #{tpu_custom_call.1} parent=1 // pred_check
      _
    $region15: #{tpu_custom_call.1} parent=1 // pred_check_branch
      %61 = sbr.rel (0) target = $region17
    $region16: #{tpu_custom_call.1} parent=1 // pred_region
      _
    $region17: #{tpu_custom_call.1} parent=1 // pred_fallthru
      _
    // Predicated region
    $region18: #{tpu_custom_call.1} parent=1 // pred_check
      _
    $region19: #{tpu_custom_call.1} parent=1 // pred_check_branch
      %63 = sbr.rel (0) target = $region21
    $region20: #{tpu_custom_call.1} parent=1 // pred_region
      _
    $region21: #{tpu_custom_call.1} parent=1 // pred_fallthru
      _
    // Predicated region
    $region22: #{tpu_custom_call.1} parent=1 // pred_check
      _
    $region23: #{tpu_custom_call.1} parent=1 // pred_check_branch
      %65 = sbr.rel (0) target = $region25
    $region24: #{tpu_custom_call.1} parent=1 // pred_region
      %67 = vsyncadd [#allocation6], 0
      %s68 = sshll.u32 %s5, 4
      %s69 = int_to_ptr.hbm [resolvable:$true] %s68
      %s70 = sshll.u32 [#allocation7], 4
      %s71 = int_to_ptr.vmem [resolvable:$true] %s70
      %76 = dma.hbm_to_vmem [thread:$0]  %s69, 256, %s71, [#allocation6], 128, 128, 8
    $region25: #{tpu_custom_call.1} parent=1 // pred_fallthru
      _
    // Predicated region
    $region26: #{tpu_custom_call.1} parent=1 // pred_check
      _
    $region27: #{tpu_custom_call.1} parent=1 // pred_check_branch
      %78 = sbr.rel (0) target = $region29
    $region28: #{tpu_custom_call.1} parent=1 // pred_region
      %80 = vsyncadd [#allocation9], 0
      %s81 = sshll.u32 %s6, 4
      %s82 = int_to_ptr.hbm [resolvable:$true] %s81
      %s83 = sshll.u32 [#allocation8], 4
      %s84 = int_to_ptr.vmem [resolvable:$true] %s83
      %89 = dma.hbm_to_vmem [thread:$0]  %s82, 256, %s84, [#allocation9], 128, 128, 8
    $region29: #{tpu_custom_call.1} parent=1 // pred_fallthru
      _
    // Predicated region
    $region30: #{tpu_custom_call.1} parent=1 // pred_check
      _
    $region31: #{tpu_custom_call.1} parent=1 // pred_check_branch
      %91 = sbr.rel (0) target = $region33
    $region32: #{tpu_custom_call.1} parent=1 // pred_region
      %93 = vsyncadd [#allocation9], 0
      %s94 = sshll.u32 %s7, 4
      %s95 = int_to_ptr.hbm [resolvable:$true] %s94
      %s96 = sshll.u32 [#allocation10], 4
      %s97 = int_to_ptr.vmem [resolvable:$true] %s96
      %102 = dma.hbm_to_vmem [thread:$0]  %s95, 256, %s97, [#allocation9], 128, 128, 8
    $region33: #{tpu_custom_call.1} parent=1 // pred_fallthru
      _
    // Predicated region
    $region34: #{tpu_custom_call.1} parent=1 // pred_check
      _
    $region35: #{tpu_custom_call.1} parent=1 // pred_check_branch
      %104 = sbr.rel (0) target = $region37
    $region36: #{tpu_custom_call.1} parent=1 // pred_region
      %106 = vsyncadd [#allocation12], 0
      %s108 = sshll.u32 %s8, 4
      %s109 = int_to_ptr.hbm [resolvable:$true] %s108
      %s110 = sshll.u32 [#allocation11], 4
      %s111 = int_to_ptr.vmem [resolvable:$true] %s110
      %113 = dma.hbm_to_vmem [thread:$0]  %s109, 16, %s111, [#allocation12]
    $region37: #{tpu_custom_call.1} parent=1 // pred_fallthru
      _
    // Predicated region
    $region38: #{tpu_custom_call.1} parent=1 // pred_check
      _
    $region39: #{tpu_custom_call.1} parent=1 // pred_check_branch
      %115 = sbr.rel (0) target = $region41
    $region40: #{tpu_custom_call.1} parent=1 // pred_region
      %117 = vsyncadd [#allocation12], 0
      %s119 = sshll.u32 %s9, 4
      %s120 = int_to_ptr.hbm [resolvable:$true] %s119
      %s121 = sshll.u32 [#allocation13], 4
      %s122 = int_to_ptr.vmem [resolvable:$true] %s121
      %124 = dma.hbm_to_vmem [thread:$0]  %s120, 16, %s122, [#allocation12]
    $region41: #{tpu_custom_call.1} parent=1 // pred_fallthru
      _
    // Predicated region
    $region42: #{tpu_custom_call.1} parent=1 // pred_check
      _
    $region43: #{tpu_custom_call.1} parent=1 // pred_check_branch
      %126 = sbr.rel (0) target = $region45
    $region44: #{tpu_custom_call.1} parent=1 // pred_region
      %128 = vsyncadd [#allocation15], 0
      %s130 = sshll.u32 %s10, 4
      %s131 = int_to_ptr.hbm [resolvable:$true] %s130
      %s132 = sshll.u32 [#allocation14], 4
      %s133 = int_to_ptr.vmem [resolvable:$true] %s132
      %135 = dma.hbm_to_vmem [thread:$0]  %s131, 16, %s133, [#allocation15]
    $region45: #{tpu_custom_call.1} parent=1 // pred_fallthru
      _
    // Predicated region
    $region46: #{tpu_custom_call.1} parent=1 // pred_check
      _
    $region47: #{tpu_custom_call.1} parent=1 // pred_check_branch
      %137 = sbr.rel (0) target = $region49
    $region48: #{tpu_custom_call.1} parent=1 // pred_region
      _
    $region49: #{tpu_custom_call.1} parent=1 // pred_fallthru
      _
    // Predicated region
    $region50: #{tpu_custom_call.1} parent=1 // pred_check
      _
    $region51: #{tpu_custom_call.1} parent=1 // pred_check_branch
      %139 = sbr.rel (0) target = $region53
    $region52: #{tpu_custom_call.1} parent=1 // pred_region
      _
    $region53: #{tpu_custom_call.1} parent=1 // pred_fallthru
      _
    // Predicated region
    $region54: #{tpu_custom_call.1} parent=1 // pred_check
      _
    $region55: #{tpu_custom_call.1} parent=1 // pred_check_branch
      %141 = sbr.rel (0) target = $region57
    $region56: #{tpu_custom_call.1} parent=1 // pred_region
      _
    $region57: #{tpu_custom_call.1} parent=1 // pred_fallthru
      _
    // Predicated region
    $region58: #{tpu_custom_call.1} parent=1 // pred_check
      _
    $region59: #{tpu_custom_call.1} parent=1 // pred_check_branch
      %143 = sbr.rel (0) target = $region61
    $region60: #{tpu_custom_call.1} parent=1 // pred_region
      _
    $region61: #{tpu_custom_call.1} parent=1 // pred_fallthru
      _
    // Predicated region
    $region62: #{tpu_custom_call.1} parent=1 // pred_check
      _
    $region63: #{tpu_custom_call.1} parent=1 // pred_check_branch
      %145 = sbr.rel (0) target = $region65
    $region64: #{tpu_custom_call.1} parent=1 // pred_region
      _
    $region65: #{tpu_custom_call.1} parent=1 // pred_fallthru
      _
    // Predicated region
    $region66: #{tpu_custom_call.1} parent=1 // pred_check
      _
    $region67: #{tpu_custom_call.1} parent=1 // pred_check_branch
      %147 = sbr.rel (0) target = $region69
    $region68: #{tpu_custom_call.1} parent=1 // pred_region
      _
    $region69: #{tpu_custom_call.1} parent=1 // pred_fallthru
      _
    // Predicated region
    $region70: #{tpu_custom_call.1} parent=1 // pred_check
      _
    $region71: #{tpu_custom_call.1} parent=1 // pred_check_branch
      %149 = sbr.rel (0) target = $region73
    $region72: #{tpu_custom_call.1} parent=1 // pred_region
      _
    $region73: #{tpu_custom_call.1} parent=1 // pred_fallthru
      _
    // Predicated region
    $region74: #{tpu_custom_call.1} parent=1 // pred_check
      _
    $region75: #{tpu_custom_call.1} parent=1 // pred_check_branch
      %151 = sbr.rel (0) target = $region77
    $region76: #{tpu_custom_call.1} parent=1 // pred_region
      _
    $region77: #{tpu_custom_call.1} parent=1 // pred_fallthru
      _
    // Predicated region
    $region78: #{tpu_custom_call.1} parent=1 // pred_check
      _
    $region79: #{tpu_custom_call.1} parent=1 // pred_check_branch
      %153 = sbr.rel (0) target = $region81
    $region80: #{tpu_custom_call.1} parent=1 // pred_region
      _
    $region81: #{tpu_custom_call.1} parent=1 // pred_fallthru
      _
    // Predicated region
    $region82: #{tpu_custom_call.1} parent=1 // pred_check
      _
    $region83: #{tpu_custom_call.1} parent=1 // pred_check_branch
      %155 = sbr.rel (0) target = $region85
    $region84: #{tpu_custom_call.1} parent=1 // pred_region
      _
    $region85: #{tpu_custom_call.1} parent=1 // pred_fallthru
      _
    // Predicated region
    $region86: #{tpu_custom_call.1} parent=1 // pred_check
      _
    $region87: #{tpu_custom_call.1} parent=1 // pred_check_branch
      %157 = sbr.rel (0) target = $region89
    $region88: #{tpu_custom_call.1} parent=1 // pred_region
      %159 = dma.done [#allocation3], 256
    $region89: #{tpu_custom_call.1} parent=1 // pred_fallthru
      _
    // Predicated region
    $region90: #{tpu_custom_call.1} parent=1 // pred_check
      _
    $region91: #{tpu_custom_call.1} parent=1 // pred_check_branch
      %161 = sbr.rel (0) target = $region93
    $region92: #{tpu_custom_call.1} parent=1 // pred_region
      %163 = dma.done [#allocation6], 256
    $region93: #{tpu_custom_call.1} parent=1 // pred_fallthru
      _
    // Predicated region
    $region94: #{tpu_custom_call.1} parent=1 // pred_check
      _
    $region95: #{tpu_custom_call.1} parent=1 // pred_check_branch
      %165 = sbr.rel (0) target = $region97
    $region96: #{tpu_custom_call.1} parent=1 // pred_region
      %167 = dma.done [#allocation6], 256
    $region97: #{tpu_custom_call.1} parent=1 // pred_fallthru
      _
    // Predicated region
    $region98: #{tpu_custom_call.1} parent=1 // pred_check
      _
    $region99: #{tpu_custom_call.1} parent=1 // pred_check_branch
      %169 = sbr.rel (0) target = $region101
    $region100: #{tpu_custom_call.1} parent=1 // pred_region
      %171 = dma.done [#allocation9], 256
    $region101: #{tpu_custom_call.1} parent=1 // pred_fallthru
      _
    // Predicated region
    $region102: #{tpu_custom_call.1} parent=1 // pred_check
      _
    $region103: #{tpu_custom_call.1} parent=1 // pred_check_branch
      %173 = sbr.rel (0) target = $region105
    $region104: #{tpu_custom_call.1} parent=1 // pred_region
      %175 = dma.done [#allocation9], 256
    $region105: #{tpu_custom_call.1} parent=1 // pred_fallthru
      _
    // Predicated region
    $region106: #{tpu_custom_call.1} parent=1 // pred_check
      _
    $region107: #{tpu_custom_call.1} parent=1 // pred_check_branch
      %177 = sbr.rel (0) target = $region109
    $region108: #{tpu_custom_call.1} parent=1 // pred_region
      %179 = dma.done [#allocation12], 16
    $region109: #{tpu_custom_call.1} parent=1 // pred_fallthru
      _
    // Predicated region
    $region110: #{tpu_custom_call.1} parent=1 // pred_check
      _
    $region111: #{tpu_custom_call.1} parent=1 // pred_check_branch
      %181 = sbr.rel (0) target = $region113
    $region112: #{tpu_custom_call.1} parent=1 // pred_region
      %183 = dma.done [#allocation12], 16
    $region113: #{tpu_custom_call.1} parent=1 // pred_fallthru
      _
    // Predicated region
    $region114: #{tpu_custom_call.1} parent=1 // pred_check
      _
    $region115: #{tpu_custom_call.1} parent=1 // pred_check_branch
      %185 = sbr.rel (0) target = $region117
    $region116: #{tpu_custom_call.1} parent=1 // pred_region
      %187 = dma.done [#allocation15], 16
    $region117: #{tpu_custom_call.1} parent=1 // pred_fallthru
      _
    %v188 = vld [vmem:[#allocation2] sm:$0xff]
    %v189 = vld [vmem:[#allocation2 + $0x8] sm:$0xff]
    %v190 = vld [vmem:[#allocation5] sm:$0xff]
    %v191 = vld [vmem:[#allocation5 + $0x8] sm:$0xff]
    %v192 = vld [vmem:[%s2] sm:$0xff]
    %v193 = vld [vmem:[%s2 + $0x8] sm:$0xff]
    %v194 = vld [vmem:[%s2 + $0x10] sm:$0xff]
    %v195 = vld [vmem:[%s2 + $0x18] sm:$0xff]
    %v196 = vld [vmem:[%s2 + $0x20] sm:$0xff]
    %v197 = vld [vmem:[%s2 + $0x28] sm:$0xff]
    %v198 = vld [vmem:[%s2 + $0x30] sm:$0xff]
    %v199 = vld [vmem:[%s2 + $0x38] sm:$0xff]
    %v200 = vld [vmem:[#allocation7] sm:$0xff]
    %v201 = vld [vmem:[#allocation7 + $0x8] sm:$0xff]
    %vm202 = vcmask 130048
    %v204 = vsel %vm202, %v188, 0
    %v207 = vsel %vm202, %v189, 0
    %209 = vmatpush.msra.mxu0 0.0
    %210 = vmatpush.msra.mxu0 0.0
    %211 = vmatpush.msra.mxu0 0.0
    %212 = vmatpush.msra.mxu0 0.0
    %213 = vmatpush.msra.mxu0 0.0
    %214 = vmatpush.msra.mxu0 0.0
    %215 = vmatpush.msra.mxu0 0.0
    %216 = vmatpush.msra.mxu0 0.0
    %217 = vmatpush.msra.mxu0 0.0
    %218 = vmatpush.msra.mxu0 0.0
    %219 = vmatpush.msra.mxu0 0.0
    %220 = vmatpush.msra.mxu0 0.0
    %221 = vmatpush.msra.mxu0 0.0
    %222 = vmatpush.msra.mxu0 0.0
    %223 = vmatpush.msra.mxu0 %v201
    %224 = vmatpush.msra.mxu0 %v200
    %225 = vmatmul.f32.gmra.mxu0 %v204
    %v226 = vpop.f32.mrf.mxu0
    %v227 = vadd.f32 0.0, %v226
    %228 = vmatmul.f32.gmra.mxu0 %v207
    %v229 = vpop.f32.mrf.mxu0
    %v230 = vadd.f32 0.0, %v229
    %231 = vdwg.mxu0
    %v232 = vld [vmem:[#allocation8] sm:$0xff]
    %v233 = vld [vmem:[#allocation8 + $0x8] sm:$0xff]
    %234 = vmatpush.msra.mxu0 0.0
    %235 = vmatpush.msra.mxu0 0.0
    %236 = vmatpush.msra.mxu0 0.0
    %237 = vmatpush.msra.mxu0 0.0
    %238 = vmatpush.msra.mxu0 0.0
    %239 = vmatpush.msra.mxu0 0.0
    %240 = vmatpush.msra.mxu0 0.0
    %241 = vmatpush.msra.mxu0 0.0
    %242 = vmatpush.msra.mxu0 0.0
    %243 = vmatpush.msra.mxu0 0.0
    %244 = vmatpush.msra.mxu0 0.0
    %245 = vmatpush.msra.mxu0 0.0
    %246 = vmatpush.msra.mxu0 0.0
    %247 = vmatpush.msra.mxu0 0.0
    %248 = vmatpush.msra.mxu0 %v233
    %249 = vmatpush.msra.mxu0 %v232
    %250 = vmatmul.f32.gmra.mxu0 %v204
    %v251 = vpop.f32.mrf.mxu0
    %v252 = vadd.f32 0.0, %v251
    %253 = vmatmul.f32.gmra.mxu0 %v207
    %v254 = vpop.f32.mrf.mxu0
    %v255 = vadd.f32 0.0, %v254
    %256 = vdwg.mxu0
    %257 = vxpose.xlu0.b32.start [1/16] %v227, 128
    %258 = vxpose.xlu0.b32.cont [2/16] %v230, 128
    %259 = vxpose.xlu0.b32.cont [3/16] 0.0, 128
    %260 = vxpose.xlu0.b32.cont [4/16] 0.0, 128
    %261 = vxpose.xlu0.b32.cont [5/16] 0.0, 128
    %262 = vxpose.xlu0.b32.cont [6/16] 0.0, 128
    %263 = vxpose.xlu0.b32.cont [7/16] 0.0, 128
    %264 = vxpose.xlu0.b32.cont [8/16] 0.0, 128
    %265 = vxpose.xlu0.b32.cont [9/16] 0.0, 128
    %266 = vxpose.xlu0.b32.cont [10/16] 0.0, 128
    %267 = vxpose.xlu0.b32.cont [11/16] 0.0, 128
    %268 = vxpose.xlu0.b32.cont [12/16] 0.0, 128
    %269 = vxpose.xlu0.b32.cont [13/16] 0.0, 128
    %270 = vxpose.xlu0.b32.cont [14/16] 0.0, 128
    %271 = vxpose.xlu0.b32.cont [15/16] 0.0, 128
    %272 = vxpose.xlu0.b32.end [16/16] 0.0, 128
    %v273 = vpop.trf.xlu0
    %v274 = vpop.trf.xlu0
    %v275 = vpop.trf.xlu0
    %v276 = vpop.trf.xlu0
    %v277 = vpop.trf.xlu0
    %v278 = vpop.trf.xlu0
    %v279 = vpop.trf.xlu0
    %v280 = vpop.trf.xlu0
    %v281 = vpop.trf.xlu0
    %v282 = vpop.trf.xlu0
    %v283 = vpop.trf.xlu0
    %v284 = vpop.trf.xlu0
    %v285 = vpop.trf.xlu0
    %v286 = vpop.trf.xlu0
    %v287 = vpop.trf.xlu0
    %v288 = vpop.trf.xlu0
    %v289 = vperm.slane %v273, 0
    %v290 = vlaneseq
    %v291 = vshrl.u32 %v290, 7
    %293 = vset.pattern.permute.xlu0 %v291
    %294 = vperm.xlu0 %293, %v289
    %v295 = vpop.permute.xlu0 %294
    %v296 = vlaneseq
    %v297 = vshrl.u32 %v296, 7
    %v298 = vadd.s32 %v297, 8
    %299 = vset.pattern.permute.xlu0 %v298
    %300 = vperm.xlu0 %299, %v289
    %v301 = vpop.permute.xlu0 %300
    %v302 = vperm.slane %v273, 1
    %v303 = vlaneseq
    %v304 = vshrl.u32 %v303, 7
    %306 = vset.pattern.permute.xlu0 %v304
    %307 = vperm.xlu0 %306, %v302
    %v308 = vpop.permute.xlu0 %307
    %v309 = vlaneseq
    %v310 = vshrl.u32 %v309, 7
    %v311 = vadd.s32 %v310, 8
    %312 = vset.pattern.permute.xlu0 %v311
    %313 = vperm.xlu0 %312, %v302
    %v314 = vpop.permute.xlu0 %313
    %v315 = vperm.slane %v273, 2
    %v316 = vlaneseq
    %v317 = vshrl.u32 %v316, 7
    %319 = vset.pattern.permute.xlu0 %v317
    %320 = vperm.xlu0 %319, %v315
    %v321 = vpop.permute.xlu0 %320
    %v322 = vlaneseq
    %v323 = vshrl.u32 %v322, 7
    %v324 = vadd.s32 %v323, 8
    %325 = vset.pattern.permute.xlu0 %v324
    %326 = vperm.xlu0 %325, %v315
    %v327 = vpop.permute.xlu0 %326
    %v328 = vperm.slane %v273, 3
    %v329 = vlaneseq
    %v330 = vshrl.u32 %v329, 7
    %332 = vset.pattern.permute.xlu0 %v330
    %333 = vperm.xlu0 %332, %v328
    %v334 = vpop.permute.xlu0 %333
    %v335 = vlaneseq
    %v336 = vshrl.u32 %v335, 7
    %v337 = vadd.s32 %v336, 8
    %338 = vset.pattern.permute.xlu0 %v337
    %339 = vperm.xlu0 %338, %v328
    %v340 = vpop.permute.xlu0 %339
    %v341 = vmul.f32 %v192, %v295
    %v342 = vmul.f32 %v193, %v301
    %v343 = vmul.f32 %v194, %v308
    %v344 = vmul.f32 %v195, %v314
    %v345 = vmul.f32 %v196, %v321
    %v346 = vmul.f32 %v197, %v327
    %v347 = vmul.f32 %v198, %v334
    %v348 = vmul.f32 %v199, %v340
    %v349 = vsel %vm202, %v341, 0.0
    %v350 = vsel %vm202, %v343, 0.0
    %v351 = vadd.f32 %v349, %v350
    %v352 = vsel %vm202, %v345, 0.0
    %v353 = vadd.f32 %v351, %v352
    %v354 = vsel %vm202, %v347, 0.0
    %v355 = vadd.f32 %v353, %v354
    %v356 = vsel %vm202, %v342, 0.0
    %v357 = vsel %vm202, %v344, 0.0
    %v358 = vadd.f32 %v356, %v357
    %v359 = vsel %vm202, %v346, 0.0
    %v360 = vadd.f32 %v358, %v359
    %v361 = vsel %vm202, %v348, 0.0
    %v362 = vadd.f32 %v360, %v361
    %vm363 = vcmask 31744
    %v365 = vsel %vm363, %v227, 0
    %v368 = vsel %vm363, %v230, 0
    %v371 = vsel %vm363, %v252, 0
    %v374 = vsel %vm363, %v255, 0
    %376 = vmatpush.xpose.msra.mxu0 0.0
    %377 = vmatpush.xpose.msra.mxu0 0.0
    %378 = vmatpush.xpose.msra.mxu0 0.0
    %379 = vmatpush.xpose.msra.mxu0 0.0
    %380 = vmatpush.xpose.msra.mxu0 0.0
    %381 = vmatpush.xpose.msra.mxu0 0.0
    %382 = vmatpush.xpose.msra.mxu0 0.0
    %383 = vmatpush.xpose.msra.mxu0 0.0
    %384 = vmatpush.xpose.msra.mxu0 0.0
    %385 = vmatpush.xpose.msra.mxu0 0.0
    %386 = vmatpush.xpose.msra.mxu0 0.0
    %387 = vmatpush.xpose.msra.mxu0 0.0
    %388 = vmatpush.xpose.msra.mxu0 0.0
    %389 = vmatpush.xpose.msra.mxu0 0.0
    %390 = vmatpush.xpose.msra.mxu0 %v374
    %391 = vmatpush.xpose.msra.mxu0 %v371
    %392 = vmatmul.f32.gmra.mxu0 %v365
    %v393 = vpop.f32.mrf.mxu0
    %v394 = vadd.f32 %v355, %v393
    %395 = vmatmul.f32.gmra.mxu0 %v368
    %v396 = vpop.f32.mrf.mxu0
    %v397 = vadd.f32 %v362, %v396
    %398 = vdwg.mxu0
    %v399 = vmul.f32 %v394, 0.5
    %v400 = vmul.f32 %v397, 0.5
    %v401 = vadd.f32 %v399, %v190
    %v402 = vadd.f32 %v400, %v191
    %v403 = vsel %vm202, %v401, -inf
    %404 = vmax.xlane.f32.xlu0 %v403
    %v405 = vpop.xlane.xlu0 %404
    %v406 = vsel %vm202, %v402, -inf
    %407 = vmax.xlane.f32.xlu0 %v406
    %v408 = vpop.xlane.xlu0 %407
    %v409 = vsub.f32 %v401, %v405
    %v410 = vsub.f32 %v402, %v408
    %v411 = vmul.f32 %v409, 1.442695
    %v412 = vpow.pop %v411
    %v413 = vmul.f32 %v410, 1.442695
    %v414 = vpow.pop %v413
    %v415 = vsel %vm202, %v412, 0.0
    %416 = vadd.xlane.f32.xlu0 %v415
    %v417 = vpop.xlane.xlu0 %416
    %v418 = vsel %vm202, %v414, 0.0
    %419 = vadd.xlane.f32.xlu0 %v418
    %v420 = vpop.xlane.xlu0 %419
    %v421 = vrcp.pop %v417
    %v422 = vrcp.pop %v420
    %v423 = vmul.f32 %v412, %v421
    %v424 = vmul.f32 %v414, %v422
    %425 = vrot.lane.b32.xlu0 %v252, 112
    %v426 = vpop.permute.xlu0 %425
    %427 = vrot.lane.b32.xlu0 %v255, 112
    %v428 = vpop.permute.xlu0 %427
    %v432 = vsel %vm202, %v423, 0
    %v435 = vsel %vm202, %v424, 0
    %437 = vmatpush.msra.mxu0 0.0
    %438 = vmatpush.msra.mxu0 0.0
    %439 = vmatpush.msra.mxu0 0.0
    %440 = vmatpush.msra.mxu0 0.0
    %441 = vmatpush.msra.mxu0 0.0
    %442 = vmatpush.msra.mxu0 0.0
    %443 = vmatpush.msra.mxu0 0.0
    %444 = vmatpush.msra.mxu0 0.0
    %445 = vmatpush.msra.mxu0 0.0
    %446 = vmatpush.msra.mxu0 0.0
    %447 = vmatpush.msra.mxu0 0.0
    %448 = vmatpush.msra.mxu0 0.0
    %449 = vmatpush.msra.mxu0 0.0
    %450 = vmatpush.msra.mxu0 0.0
    %451 = vmatpush.msra.mxu0 %v428
    %452 = vmatpush.msra.mxu0 %v426
    %453 = vmatmul.f32.gmra.mxu0 %v432
    %v454 = vpop.f32.mrf.mxu0
    %v455 = vadd.f32 0.0, %v454
    %456 = vmatmul.f32.gmra.mxu0 %v435
    %v457 = vpop.f32.mrf.mxu0
    %v458 = vadd.f32 0.0, %v457
    %459 = vdwg.mxu0
    %v460 = vperm.slane %v273, 4
    %v461 = vlaneseq
    %v462 = vshrl.u32 %v461, 7
    %464 = vset.pattern.permute.xlu0 %v462
    %465 = vperm.xlu0 %464, %v460
    %v466 = vpop.permute.xlu0 %465
    %v467 = vlaneseq
    %v468 = vshrl.u32 %v467, 7
    %v469 = vadd.s32 %v468, 8
    %470 = vset.pattern.permute.xlu0 %v469
    %471 = vperm.xlu0 %470, %v460
    %v472 = vpop.permute.xlu0 %471
    %v473 = vperm.slane %v273, 5
    %v474 = vlaneseq
    %v475 = vshrl.u32 %v474, 7
    %477 = vset.pattern.permute.xlu0 %v475
    %478 = vperm.xlu0 %477, %v473
    %v479 = vpop.permute.xlu0 %478
    %v480 = vlaneseq
    %v481 = vshrl.u32 %v480, 7
    %v482 = vadd.s32 %v481, 8
    %483 = vset.pattern.permute.xlu0 %v482
    %484 = vperm.xlu0 %483, %v473
    %v485 = vpop.permute.xlu0 %484
    %v486 = vperm.slane %v273, 6
    %v487 = vlaneseq
    %v488 = vshrl.u32 %v487, 7
    %490 = vset.pattern.permute.xlu0 %v488
    %491 = vperm.xlu0 %490, %v486
    %v492 = vpop.permute.xlu0 %491
    %v493 = vlaneseq
    %v494 = vshrl.u32 %v493, 7
    %v495 = vadd.s32 %v494, 8
    %496 = vset.pattern.permute.xlu0 %v495
    %497 = vperm.xlu0 %496, %v486
    %v498 = vpop.permute.xlu0 %497
    %v499 = vperm.slane %v273, 7
    %v500 = vlaneseq
    %v501 = vshrl.u32 %v500, 7
    %503 = vset.pattern.permute.xlu0 %v501
    %504 = vperm.xlu0 %503, %v499
    %v505 = vpop.permute.xlu0 %504
    %v506 = vlaneseq
    %v507 = vshrl.u32 %v506, 7
    %v508 = vadd.s32 %v507, 8
    %509 = vset.pattern.permute.xlu0 %v508
    %510 = vperm.xlu0 %509, %v499
    %v511 = vpop.permute.xlu0 %510
    %v512 = vmul.f32 %v192, %v466
    %v513 = vmul.f32 %v193, %v472
    %v514 = vmul.f32 %v194, %v479
    %v515 = vmul.f32 %v195, %v485
    %v516 = vmul.f32 %v196, %v492
    %v517 = vmul.f32 %v197, %v498
    %v518 = vmul.f32 %v198, %v505
    %v519 = vmul.f32 %v199, %v511
    %v520 = vsel %vm202, %v512, 0.0
    %v521 = vsel %vm202, %v514, 0.0
    %v522 = vadd.f32 %v520, %v521
    %v523 = vsel %vm202, %v516, 0.0
    %v524 = vadd.f32 %v522, %v523
    %v525 = vsel %vm202, %v518, 0.0
    %v526 = vadd.f32 %v524, %v525
    %v527 = vsel %vm202, %v513, 0.0
    %v528 = vsel %vm202, %v515, 0.0
    %v529 = vadd.f32 %v527, %v528
    %v530 = vsel %vm202, %v517, 0.0
    %v531 = vadd.f32 %v529, %v530
    %v532 = vsel %vm202, %v519, 0.0
    %v533 = vadd.f32 %v531, %v532
    %534 = vrot.lane.b32.xlu0 %v227, 124
    %v535 = vpop.permute.xlu0 %534
    %536 = vrot.lane.b32.xlu0 %v230, 124
    %v537 = vpop.permute.xlu0 %536
    %538 = vrot.lane.b32.xlu0 %v252, 124
    %v539 = vpop.permute.xlu0 %538
    %540 = vrot.lane.b32.xlu0 %v255, 124
    %v541 = vpop.permute.xlu0 %540
    %v542 = vsel %vm363, %v535, 0
    %v544 = vsel %vm363, %v537, 0
    %v546 = vsel %vm363, %v539, 0
    %v548 = vsel %vm363, %v541, 0
    %550 = vmatpush.xpose.msra.mxu0 0.0
    %551 = vmatpush.xpose.msra.mxu0 0.0
    %552 = vmatpush.xpose.msra.mxu0 0.0
    %553 = vmatpush.xpose.msra.mxu0 0.0
    %554 = vmatpush.xpose.msra.mxu0 0.0
    %555 = vmatpush.xpose.msra.mxu0 0.0
    %556 = vmatpush.xpose.msra.mxu0 0.0
    %557 = vmatpush.xpose.msra.mxu0 0.0
    %558 = vmatpush.xpose.msra.mxu0 0.0
    %559 = vmatpush.xpose.msra.mxu0 0.0
    %560 = vmatpush.xpose.msra.mxu0 0.0
    %561 = vmatpush.xpose.msra.mxu0 0.0
    %562 = vmatpush.xpose.msra.mxu0 0.0
    %563 = vmatpush.xpose.msra.mxu0 0.0
    %564 = vmatpush.xpose.msra.mxu0 %v548
    %565 = vmatpush.xpose.msra.mxu0 %v546
    %566 = vmatmul.f32.gmra.mxu0 %v542
    %v567 = vpop.f32.mrf.mxu0
    %v568 = vadd.f32 %v526, %v567
    %569 = vmatmul.f32.gmra.mxu0 %v544
    %v570 = vpop.f32.mrf.mxu0
    %v571 = vadd.f32 %v533, %v570
    %572 = vdwg.mxu0
    %v573 = vmul.f32 %v568, 0.5
    %v574 = vmul.f32 %v571, 0.5
    %v575 = vadd.f32 %v573, %v190
    %v576 = vadd.f32 %v574, %v191
    %v577 = vsel %vm202, %v575, -inf
    %578 = vmax.xlane.f32.xlu0 %v577
    %v579 = vpop.xlane.xlu0 %578
    %v580 = vsel %vm202, %v576, -inf
    %581 = vmax.xlane.f32.xlu0 %v580
    %v582 = vpop.xlane.xlu0 %581
    %v583 = vsub.f32 %v575, %v579
    %v584 = vsub.f32 %v576, %v582
    %v585 = vmul.f32 %v583, 1.442695
    %v586 = vpow.pop %v585
    %v587 = vmul.f32 %v584, 1.442695
    %v588 = vpow.pop %v587
    %v589 = vsel %vm202, %v586, 0.0
    %590 = vadd.xlane.f32.xlu0 %v589
    %v591 = vpop.xlane.xlu0 %590
    %v592 = vsel %vm202, %v588, 0.0
    %593 = vadd.xlane.f32.xlu0 %v592
    %v594 = vpop.xlane.xlu0 %593
    %v595 = vrcp.pop %v591
    %v596 = vrcp.pop %v594
    %v597 = vmul.f32 %v586, %v595
    %v598 = vmul.f32 %v588, %v596
    %599 = vrot.lane.b32.xlu0 %v252, 108
    %v600 = vpop.permute.xlu0 %599
    %601 = vrot.lane.b32.xlu0 %v255, 108
    %v602 = vpop.permute.xlu0 %601
    %v606 = vsel %vm202, %v597, 0
    %v609 = vsel %vm202, %v598, 0
    %611 = vmatpush.msra.mxu0 0.0
    %612 = vmatpush.msra.mxu0 0.0
    %613 = vmatpush.msra.mxu0 0.0
    %614 = vmatpush.msra.mxu0 0.0
    %615 = vmatpush.msra.mxu0 0.0
    %616 = vmatpush.msra.mxu0 0.0
    %617 = vmatpush.msra.mxu0 0.0
    %618 = vmatpush.msra.mxu0 0.0
    %619 = vmatpush.msra.mxu0 0.0
    %620 = vmatpush.msra.mxu0 0.0
    %621 = vmatpush.msra.mxu0 0.0
    %622 = vmatpush.msra.mxu0 0.0
    %623 = vmatpush.msra.mxu0 0.0
    %624 = vmatpush.msra.mxu0 0.0
    %625 = vmatpush.msra.mxu0 %v602
    %626 = vmatpush.msra.mxu0 %v600
    %627 = vmatmul.f32.gmra.mxu0 %v606
    %v628 = vpop.f32.mrf.mxu0
    %v629 = vadd.f32 0.0, %v628
    %630 = vmatmul.f32.gmra.mxu0 %v609
    %v631 = vpop.f32.mrf.mxu0
    %v632 = vadd.f32 0.0, %v631
    %633 = vdwg.mxu0
    %v634 = vperm.slane %v274, 0
    %v635 = vlaneseq
    %v636 = vshrl.u32 %v635, 7
    %638 = vset.pattern.permute.xlu0 %v636
    %639 = vperm.xlu0 %638, %v634
    %v640 = vpop.permute.xlu0 %639
    %v641 = vlaneseq
    %v642 = vshrl.u32 %v641, 7
    %v643 = vadd.s32 %v642, 8
    %644 = vset.pattern.permute.xlu0 %v643
    %645 = vperm.xlu0 %644, %v634
    %v646 = vpop.permute.xlu0 %645
    %v647 = vperm.slane %v274, 1
    %v648 = vlaneseq
    %v649 = vshrl.u32 %v648, 7
    %651 = vset.pattern.permute.xlu0 %v649
    %652 = vperm.xlu0 %651, %v647
    %v653 = vpop.permute.xlu0 %652
    %v654 = vlaneseq
    %v655 = vshrl.u32 %v654, 7
    %v656 = vadd.s32 %v655, 8
    %657 = vset.pattern.permute.xlu0 %v656
    %658 = vperm.xlu0 %657, %v647
    %v659 = vpop.permute.xlu0 %658
    %v660 = vperm.slane %v274, 2
    %v661 = vlaneseq
    %v662 = vshrl.u32 %v661, 7
    %664 = vset.pattern.permute.xlu0 %v662
    %665 = vperm.xlu0 %664, %v660
    %v666 = vpop.permute.xlu0 %665
    %v667 = vlaneseq
    %v668 = vshrl.u32 %v667, 7
    %v669 = vadd.s32 %v668, 8
    %670 = vset.pattern.permute.xlu0 %v669
    %671 = vperm.xlu0 %670, %v660
    %v672 = vpop.permute.xlu0 %671
    %v673 = vperm.slane %v274, 3
    %v674 = vlaneseq
    %v675 = vshrl.u32 %v674, 7
    %677 = vset.pattern.permute.xlu0 %v675
    %678 = vperm.xlu0 %677, %v673
    %v679 = vpop.permute.xlu0 %678
    %v680 = vlaneseq
    %v681 = vshrl.u32 %v680, 7
    %v682 = vadd.s32 %v681, 8
    %683 = vset.pattern.permute.xlu0 %v682
    %684 = vperm.xlu0 %683, %v673
    %v685 = vpop.permute.xlu0 %684
    %v686 = vmul.f32 %v192, %v640
    %v687 = vmul.f32 %v193, %v646
    %v688 = vmul.f32 %v194, %v653
    %v689 = vmul.f32 %v195, %v659
    %v690 = vmul.f32 %v196, %v666
    %v691 = vmul.f32 %v197, %v672
    %v692 = vmul.f32 %v198, %v679
    %v693 = vmul.f32 %v199, %v685
    %v694 = vsel %vm202, %v686, 0.0
    %v695 = vsel %vm202, %v688, 0.0
    %v696 = vadd.f32 %v694, %v695
    %v697 = vsel %vm202, %v690, 0.0
    %v698 = vadd.f32 %v696, %v697
    %v699 = vsel %vm202, %v692, 0.0
    %v700 = vadd.f32 %v698, %v699
    %v701 = vsel %vm202, %v687, 0.0
    %v702 = vsel %vm202, %v689, 0.0
    %v703 = vadd.f32 %v701, %v702
    %v704 = vsel %vm202, %v691, 0.0
    %v705 = vadd.f32 %v703, %v704
    %v706 = vsel %vm202, %v693, 0.0
    %v707 = vadd.f32 %v705, %v706
    %708 = vrot.lane.b32.xlu0 %v227, 120
    %v709 = vpop.permute.xlu0 %708
    %710 = vrot.lane.b32.xlu0 %v230, 120
    %v711 = vpop.permute.xlu0 %710
    %712 = vrot.lane.b32.xlu0 %v252, 120
    %v713 = vpop.permute.xlu0 %712
    %714 = vrot.lane.b32.xlu0 %v255, 120
    %v715 = vpop.permute.xlu0 %714
    %v716 = vsel %vm363, %v709, 0
    %v718 = vsel %vm363, %v711, 0
    %v720 = vsel %vm363, %v713, 0
    %v722 = vsel %vm363, %v715, 0
    %724 = vmatpush.xpose.msra.mxu0 0.0
    %725 = vmatpush.xpose.msra.mxu0 0.0
    %726 = vmatpush.xpose.msra.mxu0 0.0
    %727 = vmatpush.xpose.msra.mxu0 0.0
    %728 = vmatpush.xpose.msra.mxu0 0.0
    %729 = vmatpush.xpose.msra.mxu0 0.0
    %730 = vmatpush.xpose.msra.mxu0 0.0
    %731 = vmatpush.xpose.msra.mxu0 0.0
    %732 = vmatpush.xpose.msra.mxu0 0.0
    %733 = vmatpush.xpose.msra.mxu0 0.0
    %734 = vmatpush.xpose.msra.mxu0 0.0
    %735 = vmatpush.xpose.msra.mxu0 0.0
    %736 = vmatpush.xpose.msra.mxu0 0.0
    %737 = vmatpush.xpose.msra.mxu0 0.0
    %738 = vmatpush.xpose.msra.mxu0 %v722
    %739 = vmatpush.xpose.msra.mxu0 %v720
    %740 = vmatmul.f32.gmra.mxu0 %v716
    %v741 = vpop.f32.mrf.mxu0
    %v742 = vadd.f32 %v700, %v741
    %743 = vmatmul.f32.gmra.mxu0 %v718
    %v744 = vpop.f32.mrf.mxu0
    %v745 = vadd.f32 %v707, %v744
    %746 = vdwg.mxu0
    %v747 = vmul.f32 %v742, 0.5
    %v748 = vmul.f32 %v745, 0.5
    %v749 = vadd.f32 %v747, %v190
    %v750 = vadd.f32 %v748, %v191
    %v751 = vsel %vm202, %v749, -inf
    %752 = vmax.xlane.f32.xlu0 %v751
    %v753 = vpop.xlane.xlu0 %752
    %v754 = vsel %vm202, %v750, -inf
    %755 = vmax.xlane.f32.xlu0 %v754
    %v756 = vpop.xlane.xlu0 %755
    %v757 = vsub.f32 %v749, %v753
    %v758 = vsub.f32 %v750, %v756
    %v759 = vmul.f32 %v757, 1.442695
    %v760 = vpow.pop %v759
    %v761 = vmul.f32 %v758, 1.442695
    %v762 = vpow.pop %v761
    %v763 = vsel %vm202, %v760, 0.0
    %764 = vadd.xlane.f32.xlu0 %v763
    %v765 = vpop.xlane.xlu0 %764
    %v766 = vsel %vm202, %v762, 0.0
    %767 = vadd.xlane.f32.xlu0 %v766
    %v768 = vpop.xlane.xlu0 %767
    %v769 = vrcp.pop %v765
    %v770 = vrcp.pop %v768
    %v771 = vmul.f32 %v760, %v769
    %v772 = vmul.f32 %v762, %v770
    %773 = vrot.lane.b32.xlu0 %v252, 104
    %v774 = vpop.permute.xlu0 %773
    %775 = vrot.lane.b32.xlu0 %v255, 104
    %v776 = vpop.permute.xlu0 %775
    %v780 = vsel %vm202, %v771, 0
    %v783 = vsel %vm202, %v772, 0
    %785 = vmatpush.msra.mxu0 0.0
    %786 = vmatpush.msra.mxu0 0.0
    %787 = vmatpush.msra.mxu0 0.0
    %788 = vmatpush.msra.mxu0 0.0
    %789 = vmatpush.msra.mxu0 0.0
    %790 = vmatpush.msra.mxu0 0.0
    %791 = vmatpush.msra.mxu0 0.0
    %792 = vmatpush.msra.mxu0 0.0
    %793 = vmatpush.msra.mxu0 0.0
    %794 = vmatpush.msra.mxu0 0.0
    %795 = vmatpush.msra.mxu0 0.0
    %796 = vmatpush.msra.mxu0 0.0
    %797 = vmatpush.msra.mxu0 0.0
    %798 = vmatpush.msra.mxu0 0.0
    %799 = vmatpush.msra.mxu0 %v776
    %800 = vmatpush.msra.mxu0 %v774
    %801 = vmatmul.f32.gmra.mxu0 %v780
    %v802 = vpop.f32.mrf.mxu0
    %v803 = vadd.f32 0.0, %v802
    %804 = vmatmul.f32.gmra.mxu0 %v783
    %v805 = vpop.f32.mrf.mxu0
    %v806 = vadd.f32 0.0, %v805
    %807 = vdwg.mxu0
    %v808 = vperm.slane %v274, 4
    %v809 = vlaneseq
    %v810 = vshrl.u32 %v809, 7
    %812 = vset.pattern.permute.xlu0 %v810
    %813 = vperm.xlu0 %812, %v808
    %v814 = vpop.permute.xlu0 %813
    %v815 = vlaneseq
    %v816 = vshrl.u32 %v815, 7
    %v817 = vadd.s32 %v816, 8
    %818 = vset.pattern.permute.xlu0 %v817
    %819 = vperm.xlu0 %818, %v808
    %v820 = vpop.permute.xlu0 %819
    %v821 = vperm.slane %v274, 5
    %v822 = vlaneseq
    %v823 = vshrl.u32 %v822, 7
    %825 = vset.pattern.permute.xlu0 %v823
    %826 = vperm.xlu0 %825, %v821
    %v827 = vpop.permute.xlu0 %826
    %v828 = vlaneseq
    %v829 = vshrl.u32 %v828, 7
    %v830 = vadd.s32 %v829, 8
    %831 = vset.pattern.permute.xlu0 %v830
    %832 = vperm.xlu0 %831, %v821
    %v833 = vpop.permute.xlu0 %832
    %v834 = vperm.slane %v274, 6
    %v835 = vlaneseq
    %v836 = vshrl.u32 %v835, 7
    %838 = vset.pattern.permute.xlu0 %v836
    %839 = vperm.xlu0 %838, %v834
    %v840 = vpop.permute.xlu0 %839
    %v841 = vlaneseq
    %v842 = vshrl.u32 %v841, 7
    %v843 = vadd.s32 %v842, 8
    %844 = vset.pattern.permute.xlu0 %v843
    %845 = vperm.xlu0 %844, %v834
    %v846 = vpop.permute.xlu0 %845
    %v847 = vperm.slane %v274, 7
    %v848 = vlaneseq
    %v849 = vshrl.u32 %v848, 7
    %851 = vset.pattern.permute.xlu0 %v849
    %852 = vperm.xlu0 %851, %v847
    %v853 = vpop.permute.xlu0 %852
    %v854 = vlaneseq
    %v855 = vshrl.u32 %v854, 7
    %v856 = vadd.s32 %v855, 8
    %857 = vset.pattern.permute.xlu0 %v856
    %858 = vperm.xlu0 %857, %v847
    %v859 = vpop.permute.xlu0 %858
    %v860 = vmul.f32 %v192, %v814
    %v861 = vmul.f32 %v193, %v820
    %v862 = vmul.f32 %v194, %v827
    %v863 = vmul.f32 %v195, %v833
    %v864 = vmul.f32 %v196, %v840
    %v865 = vmul.f32 %v197, %v846
    %v866 = vmul.f32 %v198, %v853
    %v867 = vmul.f32 %v199, %v859
    %v868 = vsel %vm202, %v860, 0.0
    %v869 = vsel %vm202, %v862, 0.0
    %v870 = vadd.f32 %v868, %v869
    %v871 = vsel %vm202, %v864, 0.0
    %v872 = vadd.f32 %v870, %v871
    %v873 = vsel %vm202, %v866, 0.0
    %v874 = vadd.f32 %v872, %v873
    %v875 = vsel %vm202, %v861, 0.0
    %v876 = vsel %vm202, %v863, 0.0
    %v877 = vadd.f32 %v875, %v876
    %v878 = vsel %vm202, %v865, 0.0
    %v879 = vadd.f32 %v877, %v878
    %v880 = vsel %vm202, %v867, 0.0
    %v881 = vadd.f32 %v879, %v880
    %882 = vrot.lane.b32.xlu0 %v227, 116
    %v883 = vpop.permute.xlu0 %882
    %884 = vrot.lane.b32.xlu0 %v230, 116
    %v885 = vpop.permute.xlu0 %884
    %886 = vrot.lane.b32.xlu0 %v252, 116
    %v887 = vpop.permute.xlu0 %886
    %888 = vrot.lane.b32.xlu0 %v255, 116
    %v889 = vpop.permute.xlu0 %888
    %v890 = vsel %vm363, %v883, 0
    %v892 = vsel %vm363, %v885, 0
    %v894 = vsel %vm363, %v887, 0
    %v896 = vsel %vm363, %v889, 0
    %898 = vmatpush.xpose.msra.mxu0 0.0
    %899 = vmatpush.xpose.msra.mxu0 0.0
    %900 = vmatpush.xpose.msra.mxu0 0.0
    %901 = vmatpush.xpose.msra.mxu0 0.0
    %902 = vmatpush.xpose.msra.mxu0 0.0
    %903 = vmatpush.xpose.msra.mxu0 0.0
    %904 = vmatpush.xpose.msra.mxu0 0.0
    %905 = vmatpush.xpose.msra.mxu0 0.0
    %906 = vmatpush.xpose.msra.mxu0 0.0
    %907 = vmatpush.xpose.msra.mxu0 0.0
    %908 = vmatpush.xpose.msra.mxu0 0.0
    %909 = vmatpush.xpose.msra.mxu0 0.0
    %910 = vmatpush.xpose.msra.mxu0 0.0
    %911 = vmatpush.xpose.msra.mxu0 0.0
    %912 = vmatpush.xpose.msra.mxu0 %v896
    %913 = vmatpush.xpose.msra.mxu0 %v894
    %914 = vmatmul.f32.gmra.mxu0 %v890
    %v915 = vpop.f32.mrf.mxu0
    %v916 = vadd.f32 %v874, %v915
    %917 = vmatmul.f32.gmra.mxu0 %v892
    %v918 = vpop.f32.mrf.mxu0
    %v919 = vadd.f32 %v881, %v918
    %920 = vdwg.mxu0
    %v921 = vmul.f32 %v916, 0.5
    %v922 = vmul.f32 %v919, 0.5
    %v923 = vadd.f32 %v921, %v190
    %v924 = vadd.f32 %v922, %v191
    %v925 = vsel %vm202, %v923, -inf
    %926 = vmax.xlane.f32.xlu0 %v925
    %v927 = vpop.xlane.xlu0 %926
    %v928 = vsel %vm202, %v924, -inf
    %929 = vmax.xlane.f32.xlu0 %v928
    %v930 = vpop.xlane.xlu0 %929
    %v931 = vsub.f32 %v923, %v927
    %v932 = vsub.f32 %v924, %v930
    %v933 = vmul.f32 %v931, 1.442695
    %v934 = vpow.pop %v933
    %v935 = vmul.f32 %v932, 1.442695
    %v936 = vpow.pop %v935
    %v937 = vsel %vm202, %v934, 0.0
    %938 = vadd.xlane.f32.xlu0 %v937
    %v939 = vpop.xlane.xlu0 %938
    %v940 = vsel %vm202, %v936, 0.0
    %941 = vadd.xlane.f32.xlu0 %v940
    %v942 = vpop.xlane.xlu0 %941
    %v943 = vrcp.pop %v939
    %v944 = vrcp.pop %v942
    %v945 = vmul.f32 %v934, %v943
    %v946 = vmul.f32 %v936, %v944
    %947 = vrot.lane.b32.xlu0 %v252, 100
    %v948 = vpop.permute.xlu0 %947
    %949 = vrot.lane.b32.xlu0 %v255, 100
    %v950 = vpop.permute.xlu0 %949
    %v954 = vsel %vm202, %v945, 0
    %v957 = vsel %vm202, %v946, 0
    %959 = vmatpush.msra.mxu0 0.0
    %960 = vmatpush.msra.mxu0 0.0
    %961 = vmatpush.msra.mxu0 0.0
    %962 = vmatpush.msra.mxu0 0.0
    %963 = vmatpush.msra.mxu0 0.0
    %964 = vmatpush.msra.mxu0 0.0
    %965 = vmatpush.msra.mxu0 0.0
    %966 = vmatpush.msra.mxu0 0.0
    %967 = vmatpush.msra.mxu0 0.0
    %968 = vmatpush.msra.mxu0 0.0
    %969 = vmatpush.msra.mxu0 0.0
    %970 = vmatpush.msra.mxu0 0.0
    %971 = vmatpush.msra.mxu0 0.0
    %972 = vmatpush.msra.mxu0 0.0
    %973 = vmatpush.msra.mxu0 %v950
    %974 = vmatpush.msra.mxu0 %v948
    %975 = vmatmul.f32.gmra.mxu0 %v954
    %v976 = vpop.f32.mrf.mxu0
    %v977 = vadd.f32 0.0, %v976
    %978 = vmatmul.f32.gmra.mxu0 %v957
    %v979 = vpop.f32.mrf.mxu0
    %v980 = vadd.f32 0.0, %v979
    %981 = vdwg.mxu0
    %984 = vrot.lane.b32.xlu0 %v629, 4
    %v985 = vpop.permute.xlu0 %984
    %986 = vrot.lane.b32.xlu0 %v632, 4
    %v987 = vpop.permute.xlu0 %986
    %992 = vrot.lane.b32.xlu0 %v803, 8
    %v993 = vpop.permute.xlu0 %992
    %994 = vrot.lane.b32.xlu0 %v806, 8
    %v995 = vpop.permute.xlu0 %994
    %1000 = vrot.lane.b32.xlu0 %v977, 12
    %v1001 = vpop.permute.xlu0 %1000
    %1002 = vrot.lane.b32.xlu0 %v980, 12
    %v1003 = vpop.permute.xlu0 %1002
    %v1006 = vsel %vm363, %v455, %v985
    %v1007 = vsel %vm363, %v458, %v987
    %vm1008 = vcmask 64512
    %v1009 = vsel %vm1008, %v1006, %v993
    %v1010 = vsel %vm1008, %v1007, %v995
    %vm1011 = vcmask 97280
    %v1012 = vsel %vm1011, %v1009, %v1001
    %v1013 = vsel %vm1011, %v1010, %v1003
    %v1014 = vld [vmem:[#allocation10] sm:$0xff]
    %v1015 = vld [vmem:[#allocation10 + $0x8] sm:$0xff]
    %v1016 = vld [vmem:[#allocation11] sm:$0x1]
    %v1018 = vperm.slane %v1016, 0
    %v1021 = vsel %vm202, %v1012, 0
    %v1024 = vsel %vm202, %v1013, 0
    %1026 = vmatpush.msra.mxu0 0.0
    %1027 = vmatpush.msra.mxu0 0.0
    %1028 = vmatpush.msra.mxu0 0.0
    %1029 = vmatpush.msra.mxu0 0.0
    %1030 = vmatpush.msra.mxu0 0.0
    %1031 = vmatpush.msra.mxu0 0.0
    %1032 = vmatpush.msra.mxu0 0.0
    %1033 = vmatpush.msra.mxu0 0.0
    %1034 = vmatpush.msra.mxu0 0.0
    %1035 = vmatpush.msra.mxu0 0.0
    %1036 = vmatpush.msra.mxu0 0.0
    %1037 = vmatpush.msra.mxu0 0.0
    %1038 = vmatpush.msra.mxu0 0.0
    %1039 = vmatpush.msra.mxu0 0.0
    %1040 = vmatpush.msra.mxu0 %v1015
    %1041 = vmatpush.msra.mxu0 %v1014
    %1042 = vmatmul.f32.gmra.mxu0 %v1021
    %v1043 = vpop.f32.mrf.mxu0
    %v1044 = vadd.f32 %v1018, %v1043
    %1045 = vmatmul.f32.gmra.mxu0 %v1024
    %v1046 = vpop.f32.mrf.mxu0
    %v1047 = vadd.f32 %v1018, %v1046
    %1048 = vdwg.mxu0
    %v1049 = vadd.f32 %v1044, %v188
    %v1050 = vadd.f32 %v1047, %v189
    %v1051 = vsel %vm202, %v1049, 0.0
    %1052 = vadd.xlane.f32.xlu0 %v1051
    %v1053 = vpop.xlane.xlu0 %1052
    %v1054 = vsel %vm202, %v1050, 0.0
    %1055 = vadd.xlane.f32.xlu0 %v1054
    %v1056 = vpop.xlane.xlu0 %1055
    %v1057 = vrcp.pop 16.0
    %v1058 = vmul.f32 16.0, %v1057
    %v1059 = vsub.f32 1.0, %v1058
    %v1060 = vmul.f32 %v1057, %v1059
    %v1061 = vadd.f32 %v1057, %v1060
    %vm1062 = vweird.f32 %v1057
    %v1063 = vsel %vm1062, %v1057, %v1061
    %v1064 = vmul.f32 %v1053, %v1063
    %v1065 = vmul.f32 %v1056, %v1063
    %v1066 = vsub.f32 %v1049, %v1064
    %v1067 = vsub.f32 %v1050, %v1065
    %v1068 = vmul.f32 %v1066, %v1066
    %v1069 = vmul.f32 %v1067, %v1067
    %v1070 = vsel %vm202, %v1068, 0.0
    %1071 = vadd.xlane.f32.xlu0 %v1070
    %v1072 = vpop.xlane.xlu0 %1071
    %v1073 = vsel %vm202, %v1069, 0.0
    %1074 = vadd.xlane.f32.xlu0 %v1073
    %v1075 = vpop.xlane.xlu0 %1074
    %v1076 = vmul.f32 %v1072, %v1063
    %v1077 = vmul.f32 %v1075, %v1063
    %v1078 = vadd.f32 %v1076, 1e-05
    %v1079 = vadd.f32 %v1077, 1e-05
    %v1080 = vrsqrt.pop %v1078
    %v1081 = vmul.f32 %v1080, %v1078
    %v1082 = vmul.f32 %v1081, %v1080
    %v1083 = vmul.f32 0.5, %v1082
    %v1084 = vsub.f32 1.5, %v1083
    %v1085 = vmul.f32 %v1080, %v1084
    %vm1086 = vweird.f32 %v1078
    %vm1087 = vweird.f32 %v1080
    %vm1088 = vmor %vm1086, %vm1087
    %v1089 = vsel %vm1088, %v1080, %v1085
    %v1090 = vrsqrt.pop %v1079
    %v1091 = vmul.f32 %v1090, %v1079
    %v1092 = vmul.f32 %v1091, %v1090
    %v1093 = vmul.f32 0.5, %v1092
    %v1094 = vsub.f32 1.5, %v1093
    %v1095 = vmul.f32 %v1090, %v1094
    %vm1096 = vweird.f32 %v1079
    %vm1097 = vweird.f32 %v1090
    %vm1098 = vmor %vm1096, %vm1097
    %v1099 = vsel %vm1098, %v1090, %v1095
    %v1100 = vmul.f32 %v1066, %v1089
    %v1101 = vmul.f32 %v1067, %v1099
    %v1102 = vld [vmem:[#allocation13] sm:$0x1]
    %v1104 = vperm.slane %v1102, 0
    %v1106 = vmul.f32 %v1100, %v1104
    %v1107 = vmul.f32 %v1101, %v1104
    %v1108 = vld [vmem:[#allocation14] sm:$0x1]
    %v1110 = vperm.slane %v1108, 0
    %v1112 = vadd.f32 %v1106, %v1110
    %v1113 = vadd.f32 %v1107, %v1110
    %v1114 = vld [vmem:[%s11] sm:$0xff]
    %v1115 = vld [vmem:[%s11 + $0x8] sm:$0xff]
    %v1116 = vld [vmem:[%s12] sm:$0x1]
    %v1118 = vperm.slane %v1116, 0
    %v1121 = vsel %vm202, %v1112, 0
    %v1124 = vsel %vm202, %v1113, 0
    %1126 = vmatpush.msra.mxu0 0.0
    %1127 = vmatpush.msra.mxu0 0.0
    %1128 = vmatpush.msra.mxu0 0.0
    %1129 = vmatpush.msra.mxu0 0.0
    %1130 = vmatpush.msra.mxu0 0.0
    %1131 = vmatpush.msra.mxu0 0.0
    %1132 = vmatpush.msra.mxu0 0.0
    %1133 = vmatpush.msra.mxu0 0.0
    %1134 = vmatpush.msra.mxu0 0.0
    %1135 = vmatpush.msra.mxu0 0.0
    %1136 = vmatpush.msra.mxu0 0.0
    %1137 = vmatpush.msra.mxu0 0.0
    %1138 = vmatpush.msra.mxu0 0.0
    %1139 = vmatpush.msra.mxu0 0.0
    %1140 = vmatpush.msra.mxu0 %v1115
    %1141 = vmatpush.msra.mxu0 %v1114
    %1142 = vmatmul.f32.gmra.mxu0 %v1121
    %v1143 = vpop.f32.mrf.mxu0
    %v1144 = vadd.f32 %v1118, %v1143
    %1145 = vmatmul.f32.gmra.mxu0 %v1124
    %v1146 = vpop.f32.mrf.mxu0
    %v1147 = vadd.f32 %v1118, %v1146
    %1148 = vdwg.mxu0
    %v1149 = vxor.u32 %v1144, 2147483648
    %v1150 = vxor.u32 %v1147, 2147483648
    %v1151 = vmul.f32 %v1149, 1.442695
    %v1152 = vpow.pop %v1151
    %v1153 = vmul.f32 %v1150, 1.442695
    %v1154 = vpow.pop %v1153
    %v1155 = vadd.f32 %v1152, 1.0
    %v1156 = vadd.f32 %v1154, 1.0
    %v1157 = vrcp.pop %v1155
    %v1158 = vmul.f32 %v1155, %v1157
    %v1159 = vsub.f32 1.0, %v1158
    %v1160 = vmul.f32 %v1157, %v1159
    %v1161 = vadd.f32 %v1157, %v1160
    %vm1162 = vweird.f32 %v1155
    %vm1163 = vweird.f32 %v1157
    %vm1164 = vmor %vm1162, %vm1163
    %v1165 = vsel %vm1164, %v1157, %v1161
    %v1166 = vand.u32 2147483647, %v1155
    %vm1167 = vcmp.eq.f32.partialorder %v1166, 8.507059e+37
    %v1168 = vand.u32 %v1155, 2147483648
    %v1169 = vor.u32 1.1754944e-38, %v1168
    %v1170 = vsel %vm1167, %v1169, %v1165
    %v1171 = vmul.f32 1.0, %v1170
    %v1172 = vrcp.pop %v1156
    %v1173 = vmul.f32 %v1156, %v1172
    %v1174 = vsub.f32 1.0, %v1173
    %v1175 = vmul.f32 %v1172, %v1174
    %v1176 = vadd.f32 %v1172, %v1175
    %vm1177 = vweird.f32 %v1156
    %vm1178 = vweird.f32 %v1172
    %vm1179 = vmor %vm1177, %vm1178
    %v1180 = vsel %vm1179, %v1172, %v1176
    %v1181 = vand.u32 2147483647, %v1156
    %vm1182 = vcmp.eq.f32.partialorder %v1181, 8.507059e+37
    %v1183 = vand.u32 %v1156, 2147483648
    %v1184 = vor.u32 1.1754944e-38, %v1183
    %v1185 = vsel %vm1182, %v1184, %v1180
    %v1186 = vmul.f32 1.0, %v1185
    %1189 = vrot.lane.b32.xlu0 %v1171, 124
    %v1190 = vpop.permute.xlu0 %1189
    %1191 = vrot.lane.b32.xlu0 %v1186, 124
    %v1192 = vpop.permute.xlu0 %1191
    %v1195 = vmul.f32 %v1144, %v1190
    %v1196 = vmul.f32 %v1147, %v1192
    %v1197 = vld [vmem:[%s3] sm:$0xff]
    %v1198 = vld [vmem:[%s3 + $0x8] sm:$0xff]
    %v1199 = vld [vmem:[%s3 + $0x10] sm:$0xff]
    %v1200 = vld [vmem:[%s3 + $0x18] sm:$0xff]
    %v1202 = vsel %vm202, %v1197, 0
    %v1205 = vsel %vm202, %v1198, 0
    %v1208 = vsel %vm202, %v1199, 0
    %v1211 = vsel %vm202, %v1200, 0
    %1213 = vmatpush.msra.mxu0 0.0
    %1214 = vmatpush.msra.mxu0 0.0
    %1215 = vmatpush.msra.mxu0 0.0
    %1216 = vmatpush.msra.mxu0 0.0
    %1217 = vmatpush.msra.mxu0 0.0
    %1218 = vmatpush.msra.mxu0 0.0
    %1219 = vmatpush.msra.mxu0 0.0
    %1220 = vmatpush.msra.mxu0 0.0
    %1221 = vmatpush.msra.mxu0 0.0
    %1222 = vmatpush.msra.mxu0 0.0
    %1223 = vmatpush.msra.mxu0 0.0
    %1224 = vmatpush.msra.mxu0 0.0
    %1225 = vmatpush.msra.mxu0 0.0
    %1226 = vmatpush.msra.mxu0 0.0
    %1227 = vmatpush.msra.mxu0 %v1196
    %1228 = vmatpush.msra.mxu0 %v1195
    %1229 = vmatmul.f32.gmra.mxu0 %v1202
    %v1230 = vpop.f32.mrf.mxu0
    %v1231 = vadd.f32 0.0, %v1230
    %1232 = vmatmul.f32.gmra.mxu0 %v1205
    %v1233 = vpop.f32.mrf.mxu0
    %v1234 = vadd.f32 0.0, %v1233
    %1235 = vmatmul.f32.gmra.mxu0 %v1208
    %v1236 = vpop.f32.mrf.mxu0
    %v1237 = vadd.f32 0.0, %v1236
    %1238 = vmatmul.f32.gmra.mxu0 %v1211
    %v1239 = vpop.f32.mrf.mxu0
    %v1240 = vadd.f32 0.0, %v1239
    %1241 = vdwg.mxu0
    %v1242 = vld [vmem:[%s13] sm:$0x7]
    %v1243 = vperm.slane %v1242, 0
    %v1244 = vmul.f32 %v1231, %v1243
    %v1245 = vmul.f32 %v1234, %v1243
    %v1246 = vperm.slane %v1242, 1
    %v1247 = vmul.f32 %v1195, %v1246
    %v1248 = vmul.f32 %v1196, %v1246
    %v1249 = vadd.f32 %v1244, %v1247
    %v1250 = vadd.f32 %v1245, %v1248
    %v1251 = vperm.slane %v1242, 2
    %v1252 = vmul.f32 %v1237, %v1251
    %v1253 = vmul.f32 %v1240, %v1251
    %v1254 = vadd.f32 %v1249, %v1252
    %v1255 = vadd.f32 %v1250, %v1253
    %v1256 = vld [vmem:[%s14] sm:$0x1]
    %v1258 = vperm.slane %v1256, 0
    %v1260 = vadd.f32 %v1254, %v1258
    %v1261 = vadd.f32 %v1255, %v1258
    %v1262 = vld [vmem:[%s15] sm:$0x1]
    %v1264 = vperm.slane %v1262, 0
    %v1266 = vmul.f32 %v1260, %v1264
    %v1267 = vmul.f32 %v1261, %v1264
    %v1268 = vld [vmem:[%s16] sm:$0x1]
    %v1270 = vperm.slane %v1268, 0
    %v1272 = vadd.f32 %v1266, %v1270
    %v1273 = vadd.f32 %v1267, %v1270
    %v1274 = vxor.u32 %v1272, 2147483648
    %v1275 = vxor.u32 %v1273, 2147483648
    %v1276 = vmul.f32 %v1274, 1.442695
    %v1277 = vpow.pop %v1276
    %v1278 = vmul.f32 %v1275, 1.442695
    %v1279 = vpow.pop %v1278
    %v1280 = vadd.f32 %v1277, 1.0
    %v1281 = vadd.f32 %v1279, 1.0
    %v1282 = vrcp.pop %v1280
    %v1283 = vmul.f32 %v1280, %v1282
    %v1284 = vsub.f32 1.0, %v1283
    %v1285 = vmul.f32 %v1282, %v1284
    %v1286 = vadd.f32 %v1282, %v1285
    %vm1287 = vweird.f32 %v1280
    %vm1288 = vweird.f32 %v1282
    %vm1289 = vmor %vm1287, %vm1288
    %v1290 = vsel %vm1289, %v1282, %v1286
    %v1291 = vand.u32 2147483647, %v1280
    %vm1292 = vcmp.eq.f32.partialorder %v1291, 8.507059e+37
    %v1293 = vand.u32 %v1280, 2147483648
    %v1294 = vor.u32 1.1754944e-38, %v1293
    %v1295 = vsel %vm1292, %v1294, %v1290
    %v1296 = vmul.f32 1.0, %v1295
    %v1297 = vrcp.pop %v1281
    %v1298 = vmul.f32 %v1281, %v1297
    %v1299 = vsub.f32 1.0, %v1298
    %v1300 = vmul.f32 %v1297, %v1299
    %v1301 = vadd.f32 %v1297, %v1300
    %vm1302 = vweird.f32 %v1281
    %vm1303 = vweird.f32 %v1297
    %vm1304 = vmor %vm1302, %vm1303
    %v1305 = vsel %vm1304, %v1297, %v1301
    %v1306 = vand.u32 2147483647, %v1281
    %vm1307 = vcmp.eq.f32.partialorder %v1306, 8.507059e+37
    %v1308 = vand.u32 %v1281, 2147483648
    %v1309 = vor.u32 1.1754944e-38, %v1308
    %v1310 = vsel %vm1307, %v1309, %v1305
    %v1311 = vmul.f32 1.0, %v1310
    %v1312 = vmul.f32 %v1272, %v1296
    %v1313 = vmul.f32 %v1273, %v1311
    %v1314 = vld [vmem:[%s17] sm:$0xf]
    %v1315 = vld [vmem:[%s18] sm:$0x1]
    %v1317 = vperm.slane %v1315, 0
    %v1320 = vsel %vm363, %v1312, 0
    %v1323 = vsel %vm363, %v1313, 0
    %vm1325 = vcmask 1043456
    %v1327 = vsel %vm1325, %v1314, 0
    %1329 = vmatpush.msra.mxu0 0.0
    %1330 = vmatpush.msra.mxu0 0.0
    %1331 = vmatpush.msra.mxu0 0.0
    %1332 = vmatpush.msra.mxu0 0.0
    %1333 = vmatpush.msra.mxu0 0.0
    %1334 = vmatpush.msra.mxu0 0.0
    %1335 = vmatpush.msra.mxu0 0.0
    %1336 = vmatpush.msra.mxu0 0.0
    %1337 = vmatpush.msra.mxu0 0.0
    %1338 = vmatpush.msra.mxu0 0.0
    %1339 = vmatpush.msra.mxu0 0.0
    %1340 = vmatpush.msra.mxu0 0.0
    %1341 = vmatpush.msra.mxu0 0.0
    %1342 = vmatpush.msra.mxu0 0.0
    %1343 = vmatpush.msra.mxu0 0.0
    %1344 = vmatpush.msra.mxu0 %v1327
    %1345 = vmatmul.f32.gmra.mxu0 %v1320
    %v1346 = vpop.f32.mrf.mxu0
    %v1347 = vadd.f32 %v1317, %v1346
    %1348 = vmatmul.f32.gmra.mxu0 %v1323
    %v1349 = vpop.f32.mrf.mxu0
    %v1350 = vadd.f32 %v1317, %v1349
    %1351 = vdwg.mxu0
    %v1352 = vadd.f32 %v1347, %v1049
    %v1353 = vadd.f32 %v1350, %v1050
    %v1354 = vld [vmem:[%s4] sm:$0x3]
    %v1356 = vsel %vm202, %v1354, 0
    %1358 = vmatpush.msra.mxu0 0.0
    %1359 = vmatpush.msra.mxu0 0.0
    %1360 = vmatpush.msra.mxu0 0.0
    %1361 = vmatpush.msra.mxu0 0.0
    %1362 = vmatpush.msra.mxu0 0.0
    %1363 = vmatpush.msra.mxu0 0.0
    %1364 = vmatpush.msra.mxu0 0.0
    %1365 = vmatpush.msra.mxu0 0.0
    %1366 = vmatpush.msra.mxu0 0.0
    %1367 = vmatpush.msra.mxu0 0.0
    %1368 = vmatpush.msra.mxu0 0.0
    %1369 = vmatpush.msra.mxu0 0.0
    %1370 = vmatpush.msra.mxu0 0.0
    %1371 = vmatpush.msra.mxu0 0.0
    %1372 = vmatpush.msra.mxu0 %v1353
    %1373 = vmatpush.msra.mxu0 %v1352
    %1374 = vmatmul.f32.gmra.mxu0 %v1356
    %v1375 = vpop.f32.mrf.mxu0
    %v1376 = vadd.f32 0.0, %v1375
    %1377 = vdwg.mxu0
    %v1378 = vld [vmem:[%s19] sm:$0xff]
    %v1379 = vld [vmem:[%s19 + $0x8] sm:$0xff]
    %v1380 = vld [vmem:[%s20] sm:$0x1]
    %v1382 = vperm.slane %v1380, 0
    %v1385 = vsel %vm202, %v1376, 0
    %1387 = vmatpush.msra.mxu0 0.0
    %1388 = vmatpush.msra.mxu0 0.0
    %1389 = vmatpush.msra.mxu0 0.0
    %1390 = vmatpush.msra.mxu0 0.0
    %1391 = vmatpush.msra.mxu0 0.0
    %1392 = vmatpush.msra.mxu0 0.0
    %1393 = vmatpush.msra.mxu0 0.0
    %1394 = vmatpush.msra.mxu0 0.0
    %1395 = vmatpush.msra.mxu0 0.0
    %1396 = vmatpush.msra.mxu0 0.0
    %1397 = vmatpush.msra.mxu0 0.0
    %1398 = vmatpush.msra.mxu0 0.0
    %1399 = vmatpush.msra.mxu0 0.0
    %1400 = vmatpush.msra.mxu0 0.0
    %1401 = vmatpush.msra.mxu0 %v1379
    %1402 = vmatpush.msra.mxu0 %v1378
    %1403 = vmatmul.f32.gmra.mxu0 %v1385
    %v1404 = vpop.f32.mrf.mxu0
    %v1405 = vadd.f32 %v1382, %v1404
    %1406 = vdwg.mxu0
    %vm1407 = vcmask 9216
    %1408 = vst.msk [vmem:[#allocation16] sm:$0x3] %vm1407, %v1405
    // Predicated region
    $region118: #{tpu_custom_call.1} parent=1 // pred_check
      _
    $region119: #{tpu_custom_call.1} parent=1 // pred_check_branch
      %1410 = sbr.rel (0) target = $region121
    $region120: #{tpu_custom_call.1} parent=1 // pred_region
      %1412 = vsyncadd [#allocation4], 0
      %s1414 = sshll.u32 [#allocation16], 4
      %s1415 = int_to_ptr.vmem [resolvable:$true] %s1414
      %s1416 = sshll.u32 %s21, 4
      %s1417 = int_to_ptr.hbm [resolvable:$true] %s1416
      %1419 = dma.vmem_to_hbm [thread:$0]  %s1415, 32, %s1417, [#allocation4]
    $region121: #{tpu_custom_call.1} parent=1 // pred_fallthru
      _
    // Predicated region
    $region122: #{tpu_custom_call.1} parent=1 // pred_check
      _
    $region123: #{tpu_custom_call.1} parent=1 // pred_check_branch
      %1421 = sbr.rel (0) target = $region125
    $region124: #{tpu_custom_call.1} parent=1 // pred_region
      %1423 = dma.done [#allocation4], 32
    $region125: #{tpu_custom_call.1} parent=1 // pred_fallthru
      _
    %1424 = vsyncpa [#allocation3], 1
    %1425 = vsyncpa [#allocation6], 1
    %1426 = vsyncpa [#allocation9], 1
    %1427 = vsyncpa [#allocation12], 1
    %1428 = vsyncpa [#allocation15], 1
    %1429 = vsyncpa [#allocation4], 1

</llo_original>
